<compile_context>
chip_gen: v6e
topology: v6e:2x2x1
jax: 0.10.0
libtpu: 0.0.40
codegen_flags: <defaults>
</compile_context>

<pallas_src>
import jax
import jax.numpy as jnp
from jax import lax
from jax.experimental import pallas as pl
from jax.experimental.pallas import tpu as pltpu


def greedy_seq_decoder_kernel(
    z_ref,        # (Bp, Z)      f32   latent
    tok0_ref,     # (Bp, 1)      int32 initial_input tokens
    wtok_ref,     # (Vp, 4H)     bf16  embedding @ packed input weights (i,f,g,o)
    wz_ref,       # (Z, 4H)      f32   packed LSTM input weights (z part)
    wmerged_ref,  # (H, 4H+Vp)   bf16  [packed recurrent weights | output proj]
    bg_ref,       # (1, 4H)      f32   packed gate biases (b_ih + b_hh)
    wfc_ref,      # (2, Z, H)    f32   fc_state weights, [hidden, cell]
    bfc_ref,      # (2, 1, H)    f32
    bout_ref,     # (1, Vp)      f32   padded cols = -1e30 so greedy never picks them
    out_ref,      # (T, Bp, Vp)  f32   logits per step (lane-dense)
):
    T, Bp, Vp = out_ref.shape
    H4 = wz_ref.shape[1]
    H = H4 // 4

    z = z_ref[...]

    # cell_state_from_context: states = tanh(Linear(z)); split -> (hidden, cell)
    h = jnp.tanh(
        jnp.dot(z, wfc_ref[0], preferred_element_type=jnp.float32) + bfc_ref[0])
    c = jnp.tanh(
        jnp.dot(z, wfc_ref[1], preferred_element_type=jnp.float32) + bfc_ref[1])

    # Hoisted constants.
    lane = lax.broadcasted_iota(jnp.int32, (Bp, Vp), 1)
    # one-hot of the initial input token, kept in bf16 (0/1 exact in bf16)
    x = jnp.where(lane == tok0_ref[...], 1.0, 0.0).astype(jnp.bfloat16)

    # time-invariant z contribution to the packed gate pre-activation
    zgate = jnp.dot(z, wz_ref[...], preferred_element_type=jnp.float32) + bg_ref[...]

    # sigmoid(x) = 0.5*tanh(0.5*x) + 0.5 : one full-vreg tanh covers all four
    # gates; the g (cell-candidate) block keeps scale 1 / shift 0 -> plain tanh.
    lane4 = lax.broadcasted_iota(jnp.int32, (1, H4), 1)
    is_g = jnp.logical_and(lane4 >= 2 * H, lane4 < 3 * H)
    g_scale = jnp.where(is_g, 1.0, 0.5)   # (1, 4H)
    g_shift = jnp.where(is_g, 0.0, 0.5)   # (1, 4H)

    wtok = wtok_ref[...]        # bf16 (Vp, 4H)
    wmerged = wmerged_ref[...]  # bf16 (H, 4H+Vp)
    bout = bout_ref[...]        # f32  (1, Vp)

    # Fully unrolled time loop (T is a small compile-time constant).
    for t in range(T):
        # One merged matmul per step: recurrent gate part + previous logits.
        merged = jnp.dot(h.astype(jnp.bfloat16), wmerged,
                         preferred_element_type=jnp.float32)   # (Bp, 4H+Vp)
        hh_part = merged[:, :H4]

        if t >= 1:
            # h still holds h_{t-1} here -> these are the step t-1 logits.
            logits = merged[:, H4:] + bout
            out_ref[t - 1] = logits
            # greedy next input: first max index (torch tie-break); padded
            # vocab columns carry -1e30 bias so they are never selected.
            maxv = jnp.max(logits, axis=1, keepdims=True)
            idx = jnp.min(jnp.where(logits == maxv, lane, Vp),
                          axis=1, keepdims=True)
            x = jnp.where(lane == idx, 1.0, 0.0).astype(jnp.bfloat16)

        # packed gates: (Bp, 4H); embedding lookup is fused into wtok
        gates = (jnp.dot(x, wtok, preferred_element_type=jnp.float32)
                 + hh_part + zgate)

        act = jnp.tanh(gates * g_scale) * g_scale + g_shift
        i_g = act[:, 0 * H:1 * H]
        f_g = act[:, 1 * H:2 * H]
        g_g = act[:, 2 * H:3 * H]
        o_g = act[:, 3 * H:4 * H]

        c = f_g * c + i_g * g_g
        h = o_g * jnp.tanh(c)

    # epilogue: logits of the final step
    logits = jnp.dot(h.astype(jnp.bfloat16), wmerged[:, H4:],
                     preferred_element_type=jnp.float32) + bout
    out_ref[T - 1] = logits


def greedy_seq_decode(z, initial_tokens, params, length):
    """Returns (outputs (B,T,V) f32, output_tokens (B,T) int32)."""
    B, Z = z.shape
    V, E = params["embedding"].shape
    H = params["w_hh"].shape[-1]
    T = int(length)

    Bp = ((B + 7) // 8) * 8            # pad batch to sublane multiple
    Vp = ((V + 127) // 128) * 128      # pad vocab to lane multiple

    # pack the 4 gates along the last axis in PyTorch order (i, f, g, o)
    def pack(w):  # (4, D, H) -> (D, 4H)
        return jnp.transpose(w, (1, 0, 2)).reshape(w.shape[1], 4 * H)

    w_x_packed = pack(params["w_x_emb"])            # (E, 4H)
    w_z_packed = pack(params["w_x_z"])              # (Z, 4H)
    w_h_packed = pack(params["w_hh"])               # (H, 4H)
    b_g_packed = pack(params["b_gate"])             # (1, 4H)

    # fold embedding lookup into the input weights: one-hot @ W_tok per step
    w_tok = jnp.dot(params["embedding"], w_x_packed)               # (V, 4H)
    w_tok = jnp.pad(w_tok, ((0, Vp - V), (0, 0))).astype(jnp.bfloat16)

    # merge recurrent weights and output projection into one per-step RHS
    w_out_p = jnp.pad(params["w_out"], ((0, 0), (0, Vp - V)))      # (H, Vp)
    w_merged = jnp.concatenate([w_h_packed, w_out_p],
                               axis=1).astype(jnp.bfloat16)        # (H, 4H+Vp)

    b_out_p = jnp.pad(params["b_out"], ((0, 0), (0, Vp - V)),
                      constant_values=-1e30)                       # (1, Vp)

    z_p = jnp.pad(z, ((0, Bp - B), (0, 0)))
    tok0_p = jnp.pad(initial_tokens.reshape(B, 1).astype(jnp.int32),
                     ((0, Bp - B), (0, 0)))

    vmem = pl.BlockSpec(memory_space=pltpu.MemorySpace.VMEM)

    slab_bytes = 4 * T * Bp * Vp
    vmem_limit = int(min(100 * 1024 * 1024, max(8 * 1024 * 1024, 6 * slab_bytes)))

    outs_tbv = pl.pallas_call(
        greedy_seq_decoder_kernel,
        out_shape=jax.ShapeDtypeStruct((T, Bp, Vp), jnp.float32),
        in_specs=[vmem] * 9,
        out_specs=vmem,
        compiler_params=pltpu.CompilerParams(vmem_limit_bytes=vmem_limit),
    )(z_p, tok0_p, w_tok, w_z_packed, w_merged, b_g_packed,
      params["w_fc"], params["b_fc"], b_out_p)

    outputs = jnp.transpose(outs_tbv[:, :B, :V], (1, 0, 2))          # (B, T, V)
    output_tokens = jnp.argmax(outputs, axis=-1).astype(jnp.int32)   # (B, T)
    return outputs, output_tokens


def init_params(key, z_size, hidden, emb, vocab):
    ks = jax.random.split(key, 9)
    s = 0.1
    return dict(
        embedding=jax.random.normal(ks[0], (vocab, emb), jnp.float32) * s,
        w_fc=jax.random.normal(ks[1], (2, z_size, hidden), jnp.float32) * s,
        b_fc=jax.random.normal(ks[2], (2, 1, hidden), jnp.float32) * s,
        w_x_emb=jax.random.normal(ks[3], (4, emb, hidden), jnp.float32) * s,
        w_x_z=jax.random.normal(ks[4], (4, z_size, hidden), jnp.float32) * s,
        w_hh=jax.random.normal(ks[5], (4, hidden, hidden), jnp.float32) * s,
        b_gate=jax.random.normal(ks[6], (4, 1, hidden), jnp.float32) * s,
        w_out=jax.random.normal(ks[7], (hidden, vocab), jnp.float32) * s,
        b_out=jax.random.normal(ks[8], (1, vocab), jnp.float32) * s,
    )


if __name__ == "__main__":
    B, Z, H, EMB, V, T = 4, 32, 32, 16, 16, 8   # batch, z_size, hidden, emb, output_size, length

    key = jax.random.PRNGKey(0)
    kz, kp = jax.random.split(key, 2)
    z = jax.random.normal(kz, (B, Z), jnp.float32)
    params = init_params(kp, Z, H, EMB, V)
    initial_tokens = (jnp.arange(B, dtype=jnp.int32) % V)   # deterministic initial_input

    outputs, tokens = greedy_seq_decode(z, initial_tokens, params, T)
    outputs = jax.block_until_ready(outputs)
    tokens = jax.block_until_ready(tokens)

    assert outputs.shape == (B, T, V) and outputs.dtype == jnp.float32
    assert tokens.shape == (B, T) and tokens.dtype == jnp.int32
    assert bool(jnp.isfinite(outputs).all())
    assert bool(((tokens >= 0) & (tokens < V)).all())
    print("KERNEL_OK")
</pallas_src>

<mosaic_0001>
module attributes {stable_mosaic.version = 11 : i64} {
  func.func @greedy_seq_decoder_kernel(%arg0: memref<8x32xf32, #tpu.memory_space<vmem>>, %arg1: memref<8x1xi32, #tpu.memory_space<vmem>>, %arg2: memref<128x128xbf16, #tpu.memory_space<vmem>>, %arg3: memref<32x128xf32, #tpu.memory_space<vmem>>, %arg4: memref<32x256xbf16, #tpu.memory_space<vmem>>, %arg5: memref<1x128xf32, #tpu.memory_space<vmem>>, %arg6: memref<2x32x32xf32, #tpu.memory_space<vmem>>, %arg7: memref<2x1x32xf32, #tpu.memory_space<vmem>>, %arg8: memref<1x128xf32, #tpu.memory_space<vmem>>, %arg9: memref<8x8x128xf32, #tpu.memory_space<vmem>>) attributes {dimension_semantics = [], scalar_prefetch = 0 : i64, scratch_operands = 0 : i64, tpu.core_type = #tpu.core_type<tc>} {
    %c0 = arith.constant 0 : index
    %c0_0 = arith.constant 0 : index
    %0 = vector.load %arg0[%c0, %c0_0] : memref<8x32xf32, #tpu.memory_space<vmem>>, vector<8x32xf32>
    %c0_1 = arith.constant 0 : index
    %c0_2 = arith.constant 0 : index
    %c0_3 = arith.constant 0 : index
    %1 = vector.load %arg6[%c0_1, %c0_2, %c0_3] : memref<2x32x32xf32, #tpu.memory_space<vmem>>, vector<1x32x32xf32>
    %2 = vector.shape_cast %1 : vector<1x32x32xf32> to vector<32x32xf32>
    %cst = arith.constant dense<0.000000e+00> : vector<8x32xf32>
    %3 = tpu.matmul %0, %2, %cst {dimension_numbers = #tpu.dot_dimension_numbers<[1], [0], [0], [1], [0, 0, 1, 1], [], []>} : vector<8x32xf32>, vector<32x32xf32>, vector<8x32xf32> -> vector<8x32xf32>
    %c0_4 = arith.constant 0 : index
    %c0_5 = arith.constant 0 : index
    %c0_6 = arith.constant 0 : index
    %4 = vector.load %arg7[%c0_4, %c0_5, %c0_6] : memref<2x1x32xf32, #tpu.memory_space<vmem>>, vector<1x1x32xf32>
    %5 = vector.shape_cast %4 : vector<1x1x32xf32> to vector<1x32xf32>
    %6 = vector.broadcast %5 : vector<1x32xf32> to vector<8x32xf32>
    %7 = arith.addf %3, %6 : vector<8x32xf32>
    %8 = math.tanh %7 : vector<8x32xf32>
    %c1 = arith.constant 1 : index
    %c0_7 = arith.constant 0 : index
    %c0_8 = arith.constant 0 : index
    %9 = vector.load %arg6[%c1, %c0_7, %c0_8] : memref<2x32x32xf32, #tpu.memory_space<vmem>>, vector<1x32x32xf32>
    %10 = vector.shape_cast %9 : vector<1x32x32xf32> to vector<32x32xf32>
    %cst_9 = arith.constant dense<0.000000e+00> : vector<8x32xf32>
    %11 = tpu.matmul %0, %10, %cst_9 {dimension_numbers = #tpu.dot_dimension_numbers<[1], [0], [0], [1], [0, 0, 1, 1], [], []>} : vector<8x32xf32>, vector<32x32xf32>, vector<8x32xf32> -> vector<8x32xf32>
    %c1_10 = arith.constant 1 : index
    %c0_11 = arith.constant 0 : index
    %c0_12 = arith.constant 0 : index
    %12 = vector.load %arg7[%c1_10, %c0_11, %c0_12] : memref<2x1x32xf32, #tpu.memory_space<vmem>>, vector<1x1x32xf32>
    %13 = vector.shape_cast %12 : vector<1x1x32xf32> to vector<1x32xf32>
    %14 = vector.broadcast %13 : vector<1x32xf32> to vector<8x32xf32>
    %15 = arith.addf %11, %14 : vector<8x32xf32>
    %16 = math.tanh %15 : vector<8x32xf32>
    %17 = tpu.iota {dimensions = array<i32: 1>} : vector<8x128xi32>
    %c0_13 = arith.constant 0 : index
    %c0_14 = arith.constant 0 : index
    %18 = vector.load %arg1[%c0_13, %c0_14] : memref<8x1xi32, #tpu.memory_space<vmem>>, vector<8x1xi32>
    %19 = vector.broadcast %18 : vector<8x1xi32> to vector<8x128xi32>
    %20 = arith.cmpi eq, %17, %19 : vector<8x128xi32>
    %cst_15 = arith.constant 1.000000e+00 : f32
    %cst_16 = arith.constant 0.000000e+00 : f32
    %21 = vector.broadcast %cst_15 : f32 to vector<8x128xf32>
    %22 = vector.broadcast %cst_16 : f32 to vector<8x128xf32>
    %23 = arith.select %20, %21, %22 : vector<8x128xi1>, vector<8x128xf32>
    %24 = arith.truncf %23 : vector<8x128xf32> to vector<8x128xbf16>
    %c0_17 = arith.constant 0 : index
    %c0_18 = arith.constant 0 : index
    %25 = vector.load %arg3[%c0_17, %c0_18] : memref<32x128xf32, #tpu.memory_space<vmem>>, vector<32x128xf32>
    %cst_19 = arith.constant dense<0.000000e+00> : vector<8x128xf32>
    %26 = tpu.matmul %0, %25, %cst_19 {dimension_numbers = #tpu.dot_dimension_numbers<[1], [0], [0], [1], [0, 0, 1, 1], [], []>} : vector<8x32xf32>, vector<32x128xf32>, vector<8x128xf32> -> vector<8x128xf32>
    %c0_20 = arith.constant 0 : index
    %c0_21 = arith.constant 0 : index
    %27 = vector.load %arg5[%c0_20, %c0_21] : memref<1x128xf32, #tpu.memory_space<vmem>>, vector<1x128xf32>
    %28 = vector.broadcast %27 : vector<1x128xf32> to vector<8x128xf32>
    %29 = arith.addf %26, %28 : vector<8x128xf32>
    %30 = tpu.iota {dimensions = array<i32: 1>} : vector<1x128xi32>
    %c64_i32 = arith.constant 64 : i32
    %31 = vector.broadcast %c64_i32 : i32 to vector<1x128xi32>
    %32 = arith.cmpi sge, %30, %31 : vector<1x128xi32>
    %c96_i32 = arith.constant 96 : i32
    %33 = vector.broadcast %c96_i32 : i32 to vector<1x128xi32>
    %34 = arith.cmpi slt, %30, %33 : vector<1x128xi32>
    %35 = arith.andi %32, %34 : vector<1x128xi1>
    %cst_22 = arith.constant 1.000000e+00 : f32
    %cst_23 = arith.constant 5.000000e-01 : f32
    %36 = vector.broadcast %cst_22 : f32 to vector<1x128xf32>
    %37 = vector.broadcast %cst_23 : f32 to vector<1x128xf32>
    %38 = arith.select %35, %36, %37 : vector<1x128xi1>, vector<1x128xf32>
    %cst_24 = arith.constant 0.000000e+00 : f32
    %cst_25 = arith.constant 5.000000e-01 : f32
    %39 = vector.broadcast %cst_24 : f32 to vector<1x128xf32>
    %40 = vector.broadcast %cst_25 : f32 to vector<1x128xf32>
    %41 = arith.select %35, %39, %40 : vector<1x128xi1>, vector<1x128xf32>
    %c0_26 = arith.constant 0 : index
    %c0_27 = arith.constant 0 : index
    %42 = vector.load %arg2[%c0_26, %c0_27] : memref<128x128xbf16, #tpu.memory_space<vmem>>, vector<128x128xbf16>
    %c0_28 = arith.constant 0 : index
    %c0_29 = arith.constant 0 : index
    %43 = vector.load %arg4[%c0_28, %c0_29] : memref<32x256xbf16, #tpu.memory_space<vmem>>, vector<32x256xbf16>
    %c0_30 = arith.constant 0 : index
    %c0_31 = arith.constant 0 : index
    %44 = vector.load %arg8[%c0_30, %c0_31] : memref<1x128xf32, #tpu.memory_space<vmem>>, vector<1x128xf32>
    %45 = arith.truncf %8 : vector<8x32xf32> to vector<8x32xbf16>
    %cst_32 = arith.constant dense<0.000000e+00> : vector<8x256xf32>
    %46 = tpu.matmul %45, %43, %cst_32 {dimension_numbers = #tpu.dot_dimension_numbers<[1], [0], [0], [1], [0, 0, 1, 1], [], []>} : vector<8x32xbf16>, vector<32x256xbf16>, vector<8x256xf32> -> vector<8x256xf32>
    %47 = vector.extract_strided_slice %46 {offsets = [0, 0], sizes = [8, 128], strides = [1, 1]} : vector<8x256xf32> to vector<8x128xf32>
    %cst_33 = arith.constant dense<0.000000e+00> : vector<8x128xf32>
    %48 = tpu.matmul %24, %42, %cst_33 {dimension_numbers = #tpu.dot_dimension_numbers<[1], [0], [0], [1], [0, 0, 1, 1], [], []>} : vector<8x128xbf16>, vector<128x128xbf16>, vector<8x128xf32> -> vector<8x128xf32>
    %49 = arith.addf %48, %47 : vector<8x128xf32>
    %50 = arith.addf %49, %29 : vector<8x128xf32>
    %51 = vector.broadcast %38 : vector<1x128xf32> to vector<8x128xf32>
    %52 = arith.mulf %50, %51 : vector<8x128xf32>
    %53 = math.tanh %52 : vector<8x128xf32>
    %54 = vector.broadcast %38 : vector<1x128xf32> to vector<8x128xf32>
    %55 = arith.mulf %53, %54 : vector<8x128xf32>
    %56 = vector.broadcast %41 : vector<1x128xf32> to vector<8x128xf32>
    %57 = arith.addf %55, %56 : vector<8x128xf32>
    %58 = vector.extract_strided_slice %57 {offsets = [0, 0], sizes = [8, 32], strides = [1, 1]} : vector<8x128xf32> to vector<8x32xf32>
    %59 = vector.extract_strided_slice %57 {offsets = [0, 32], sizes = [8, 32], strides = [1, 1]} : vector<8x128xf32> to vector<8x32xf32>
    %60 = vector.extract_strided_slice %57 {offsets = [0, 64], sizes = [8, 32], strides = [1, 1]} : vector<8x128xf32> to vector<8x32xf32>
    %61 = vector.extract_strided_slice %57 {offsets = [0, 96], sizes = [8, 32], strides = [1, 1]} : vector<8x128xf32> to vector<8x32xf32>
    %62 = arith.mulf %59, %16 : vector<8x32xf32>
    %63 = arith.mulf %58, %60 : vector<8x32xf32>
    %64 = arith.addf %62, %63 : vector<8x32xf32>
    %65 = math.tanh %64 : vector<8x32xf32>
    %66 = arith.mulf %61, %65 : vector<8x32xf32>
    %67 = arith.truncf %66 : vector<8x32xf32> to vector<8x32xbf16>
    %cst_34 = arith.constant dense<0.000000e+00> : vector<8x256xf32>
    %68 = tpu.matmul %67, %43, %cst_34 {dimension_numbers = #tpu.dot_dimension_numbers<[1], [0], [0], [1], [0, 0, 1, 1], [], []>} : vector<8x32xbf16>, vector<32x256xbf16>, vector<8x256xf32> -> vector<8x256xf32>
    %69 = vector.extract_strided_slice %68 {offsets = [0, 0], sizes = [8, 128], strides = [1, 1]} : vector<8x256xf32> to vector<8x128xf32>
    %70 = vector.extract_strided_slice %68 {offsets = [0, 128], sizes = [8, 128], strides = [1, 1]} : vector<8x256xf32> to vector<8x128xf32>
    %71 = vector.broadcast %44 : vector<1x128xf32> to vector<8x128xf32>
    %72 = arith.addf %70, %71 : vector<8x128xf32>
    %c0_35 = arith.constant 0 : index
    %c0_36 = arith.constant 0 : index
    %c0_37 = arith.constant 0 : index
    %73 = vector.load %arg9[%c0_35, %c0_36, %c0_37] : memref<8x8x128xf32, #tpu.memory_space<vmem>>, vector<1x8x128xf32>
    %74 = vector.shape_cast %73 : vector<1x8x128xf32> to vector<8x128xf32>
    %75 = vector.shape_cast %72 : vector<8x128xf32> to vector<1x8x128xf32>
    tpu.vector_store %arg9[%c0_35, %c0_36, %c0_37], %75 {strides = array<i32>} : memref<8x8x128xf32, #tpu.memory_space<vmem>>, vector<1x8x128xf32>,
    %cst_38 = arith.constant dense<0xFF800000> : vector<8xf32>
    %76 = vector.multi_reduction <maximumf>, %72, %cst_38 [1] : vector<8x128xf32> to vector<8xf32>
    %77 = vector.shape_cast %76 : vector<8xf32> to vector<8x1xf32>
    %78 = vector.broadcast %77 : vector<8x1xf32> to vector<8x128xf32>
    %79 = arith.cmpf oeq, %72, %78 : vector<8x128xf32>
    %c128_i32 = arith.constant 128 : i32
    %80 = vector.broadcast %c128_i32 : i32 to vector<8x128xi32>
    %81 = arith.select %79, %17, %80 : vector<8x128xi1>, vector<8x128xi32>
    %cst_39 = arith.constant dense<2147483647> : vector<8xi32>
    %82 = vector.multi_reduction <minsi>, %81, %cst_39 [1] : vector<8x128xi32> to vector<8xi32>
    %83 = vector.shape_cast %82 : vector<8xi32> to vector<8x1xi32>
    %84 = vector.broadcast %83 : vector<8x1xi32> to vector<8x128xi32>
    %85 = arith.cmpi eq, %17, %84 : vector<8x128xi32>
    %cst_40 = arith.constant 1.000000e+00 : f32
    %cst_41 = arith.constant 0.000000e+00 : f32
    %86 = vector.broadcast %cst_40 : f32 to vector<8x128xf32>
    %87 = vector.broadcast %cst_41 : f32 to vector<8x128xf32>
    %88 = arith.select %85, %86, %87 : vector<8x128xi1>, vector<8x128xf32>
    %89 = arith.truncf %88 : vector<8x128xf32> to vector<8x128xbf16>
    %cst_42 = arith.constant dense<0.000000e+00> : vector<8x128xf32>
    %90 = tpu.matmul %89, %42, %cst_42 {dimension_numbers = #tpu.dot_dimension_numbers<[1], [0], [0], [1], [0, 0, 1, 1], [], []>} : vector<8x128xbf16>, vector<128x128xbf16>, vector<8x128xf32> -> vector<8x128xf32>
    %91 = arith.addf %90, %69 : vector<8x128xf32>
    %92 = arith.addf %91, %29 : vector<8x128xf32>
    %93 = vector.broadcast %38 : vector<1x128xf32> to vector<8x128xf32>
    %94 = arith.mulf %92, %93 : vector<8x128xf32>
    %95 = math.tanh %94 : vector<8x128xf32>
    %96 = vector.broadcast %38 : vector<1x128xf32> to vector<8x128xf32>
    %97 = arith.mulf %95, %96 : vector<8x128xf32>
    %98 = vector.broadcast %41 : vector<1x128xf32> to vector<8x128xf32>
    %99 = arith.addf %97, %98 : vector<8x128xf32>
    %100 = vector.extract_strided_slice %99 {offsets = [0, 0], sizes = [8, 32], strides = [1, 1]} : vector<8x128xf32> to vector<8x32xf32>
    %101 = vector.extract_strided_slice %99 {offsets = [0, 32], sizes = [8, 32], strides = [1, 1]} : vector<8x128xf32> to vector<8x32xf32>
    %102 = vector.extract_strided_slice %99 {offsets = [0, 64], sizes = [8, 32], strides = [1, 1]} : vector<8x128xf32> to vector<8x32xf32>
    %103 = vector.extract_strided_slice %99 {offsets = [0, 96], sizes = [8, 32], strides = [1, 1]} : vector<8x128xf32> to vector<8x32xf32>
    %104 = arith.mulf %101, %64 : vector<8x32xf32>
    %105 = arith.mulf %100, %102 : vector<8x32xf32>
    %106 = arith.addf %104, %105 : vector<8x32xf32>
    %107 = math.tanh %106 : vector<8x32xf32>
    %108 = arith.mulf %103, %107 : vector<8x32xf32>
    %109 = arith.truncf %108 : vector<8x32xf32> to vector<8x32xbf16>
    %cst_43 = arith.constant dense<0.000000e+00> : vector<8x256xf32>
    %110 = tpu.matmul %109, %43, %cst_43 {dimension_numbers = #tpu.dot_dimension_numbers<[1], [0], [0], [1], [0, 0, 1, 1], [], []>} : vector<8x32xbf16>, vector<32x256xbf16>, vector<8x256xf32> -> vector<8x256xf32>
    %111 = vector.extract_strided_slice %110 {offsets = [0, 0], sizes = [8, 128], strides = [1, 1]} : vector<8x256xf32> to vector<8x128xf32>
    %112 = vector.extract_strided_slice %110 {offsets = [0, 128], sizes = [8, 128], strides = [1, 1]} : vector<8x256xf32> to vector<8x128xf32>
    %113 = vector.broadcast %44 : vector<1x128xf32> to vector<8x128xf32>
    %114 = arith.addf %112, %113 : vector<8x128xf32>
    %c1_44 = arith.constant 1 : index
    %c0_45 = arith.constant 0 : index
    %c0_46 = arith.constant 0 : index
    %115 = vector.load %arg9[%c1_44, %c0_45, %c0_46] : memref<8x8x128xf32, #tpu.memory_space<vmem>>, vector<1x8x128xf32>
    %116 = vector.shape_cast %115 : vector<1x8x128xf32> to vector<8x128xf32>
    %117 = vector.shape_cast %114 : vector<8x128xf32> to vector<1x8x128xf32>
    tpu.vector_store %arg9[%c1_44, %c0_45, %c0_46], %117 {strides = array<i32>} : memref<8x8x128xf32, #tpu.memory_space<vmem>>, vector<1x8x128xf32>,
    %cst_47 = arith.constant dense<0xFF800000> : vector<8xf32>
    %118 = vector.multi_reduction <maximumf>, %114, %cst_47 [1] : vector<8x128xf32> to vector<8xf32>
    %119 = vector.shape_cast %118 : vector<8xf32> to vector<8x1xf32>
    %120 = vector.broadcast %119 : vector<8x1xf32> to vector<8x128xf32>
    %121 = arith.cmpf oeq, %114, %120 : vector<8x128xf32>
    %c128_i32_48 = arith.constant 128 : i32
    %122 = vector.broadcast %c128_i32_48 : i32 to vector<8x128xi32>
    %123 = arith.select %121, %17, %122 : vector<8x128xi1>, vector<8x128xi32>
    %cst_49 = arith.constant dense<2147483647> : vector<8xi32>
    %124 = vector.multi_reduction <minsi>, %123, %cst_49 [1] : vector<8x128xi32> to vector<8xi32>
    %125 = vector.shape_cast %124 : vector<8xi32> to vector<8x1xi32>
    %126 = vector.broadcast %125 : vector<8x1xi32> to vector<8x128xi32>
    %127 = arith.cmpi eq, %17, %126 : vector<8x128xi32>
    %cst_50 = arith.constant 1.000000e+00 : f32
    %cst_51 = arith.constant 0.000000e+00 : f32
    %128 = vector.broadcast %cst_50 : f32 to vector<8x128xf32>
    %129 = vector.broadcast %cst_51 : f32 to vector<8x128xf32>
    %130 = arith.select %127, %128, %129 : vector<8x128xi1>, vector<8x128xf32>
    %131 = arith.truncf %130 : vector<8x128xf32> to vector<8x128xbf16>
    %cst_52 = arith.constant dense<0.000000e+00> : vector<8x128xf32>
    %132 = tpu.matmul %131, %42, %cst_52 {dimension_numbers = #tpu.dot_dimension_numbers<[1], [0], [0], [1], [0, 0, 1, 1], [], []>} : vector<8x128xbf16>, vector<128x128xbf16>, vector<8x128xf32> -> vector<8x128xf32>
    %133 = arith.addf %132, %111 : vector<8x128xf32>
    %134 = arith.addf %133, %29 : vector<8x128xf32>
    %135 = vector.broadcast %38 : vector<1x128xf32> to vector<8x128xf32>
    %136 = arith.mulf %134, %135 : vector<8x128xf32>
    %137 = math.tanh %136 : vector<8x128xf32>
    %138 = vector.broadcast %38 : vector<1x128xf32> to vector<8x128xf32>
    %139 = arith.mulf %137, %138 : vector<8x128xf32>
    %140 = vector.broadcast %41 : vector<1x128xf32> to vector<8x128xf32>
    %141 = arith.addf %139, %140 : vector<8x128xf32>
    %142 = vector.extract_strided_slice %141 {offsets = [0, 0], sizes = [8, 32], strides = [1, 1]} : vector<8x128xf32> to vector<8x32xf32>
    %143 = vector.extract_strided_slice %141 {offsets = [0, 32], sizes = [8, 32], strides = [1, 1]} : vector<8x128xf32> to vector<8x32xf32>
    %144 = vector.extract_strided_slice %141 {offsets = [0, 64], sizes = [8, 32], strides = [1, 1]} : vector<8x128xf32> to vector<8x32xf32>
    %145 = vector.extract_strided_slice %141 {offsets = [0, 96], sizes = [8, 32], strides = [1, 1]} : vector<8x128xf32> to vector<8x32xf32>
    %146 = arith.mulf %143, %106 : vector<8x32xf32>
    %147 = arith.mulf %142, %144 : vector<8x32xf32>
    %148 = arith.addf %146, %147 : vector<8x32xf32>
    %149 = math.tanh %148 : vector<8x32xf32>
    %150 = arith.mulf %145, %149 : vector<8x32xf32>
    %151 = arith.truncf %150 : vector<8x32xf32> to vector<8x32xbf16>
    %cst_53 = arith.constant dense<0.000000e+00> : vector<8x256xf32>
    %152 = tpu.matmul %151, %43, %cst_53 {dimension_numbers = #tpu.dot_dimension_numbers<[1], [0], [0], [1], [0, 0, 1, 1], [], []>} : vector<8x32xbf16>, vector<32x256xbf16>, vector<8x256xf32> -> vector<8x256xf32>
    %153 = vector.extract_strided_slice %152 {offsets = [0, 0], sizes = [8, 128], strides = [1, 1]} : vector<8x256xf32> to vector<8x128xf32>
    %154 = vector.extract_strided_slice %152 {offsets = [0, 128], sizes = [8, 128], strides = [1, 1]} : vector<8x256xf32> to vector<8x128xf32>
    %155 = vector.broadcast %44 : vector<1x128xf32> to vector<8x128xf32>
    %156 = arith.addf %154, %155 : vector<8x128xf32>
    %c2 = arith.constant 2 : index
    %c0_54 = arith.constant 0 : index
    %c0_55 = arith.constant 0 : index
    %157 = vector.load %arg9[%c2, %c0_54, %c0_55] : memref<8x8x128xf32, #tpu.memory_space<vmem>>, vector<1x8x128xf32>
    %158 = vector.shape_cast %157 : vector<1x8x128xf32> to vector<8x128xf32>
    %159 = vector.shape_cast %156 : vector<8x128xf32> to vector<1x8x128xf32>
    tpu.vector_store %arg9[%c2, %c0_54, %c0_55], %159 {strides = array<i32>} : memref<8x8x128xf32, #tpu.memory_space<vmem>>, vector<1x8x128xf32>,
    %cst_56 = arith.constant dense<0xFF800000> : vector<8xf32>
    %160 = vector.multi_reduction <maximumf>, %156, %cst_56 [1] : vector<8x128xf32> to vector<8xf32>
    %161 = vector.shape_cast %160 : vector<8xf32> to vector<8x1xf32>
    %162 = vector.broadcast %161 : vector<8x1xf32> to vector<8x128xf32>
    %163 = arith.cmpf oeq, %156, %162 : vector<8x128xf32>
    %c128_i32_57 = arith.constant 128 : i32
    %164 = vector.broadcast %c128_i32_57 : i32 to vector<8x128xi32>
    %165 = arith.select %163, %17, %164 : vector<8x128xi1>, vector<8x128xi32>
    %cst_58 = arith.constant dense<2147483647> : vector<8xi32>
    %166 = vector.multi_reduction <minsi>, %165, %cst_58 [1] : vector<8x128xi32> to vector<8xi32>
    %167 = vector.shape_cast %166 : vector<8xi32> to vector<8x1xi32>
    %168 = vector.broadcast %167 : vector<8x1xi32> to vector<8x128xi32>
    %169 = arith.cmpi eq, %17, %168 : vector<8x128xi32>
    %cst_59 = arith.constant 1.000000e+00 : f32
    %cst_60 = arith.constant 0.000000e+00 : f32
    %170 = vector.broadcast %cst_59 : f32 to vector<8x128xf32>
    %171 = vector.broadcast %cst_60 : f32 to vector<8x128xf32>
    %172 = arith.select %169, %170, %171 : vector<8x128xi1>, vector<8x128xf32>
    %173 = arith.truncf %172 : vector<8x128xf32> to vector<8x128xbf16>
    %cst_61 = arith.constant dense<0.000000e+00> : vector<8x128xf32>
    %174 = tpu.matmul %173, %42, %cst_61 {dimension_numbers = #tpu.dot_dimension_numbers<[1], [0], [0], [1], [0, 0, 1, 1], [], []>} : vector<8x128xbf16>, vector<128x128xbf16>, vector<8x128xf32> -> vector<8x128xf32>
    %175 = arith.addf %174, %153 : vector<8x128xf32>
    %176 = arith.addf %175, %29 : vector<8x128xf32>
    %177 = vector.broadcast %38 : vector<1x128xf32> to vector<8x128xf32>
    %178 = arith.mulf %176, %177 : vector<8x128xf32>
    %179 = math.tanh %178 : vector<8x128xf32>
    %180 = vector.broadcast %38 : vector<1x128xf32> to vector<8x128xf32>
    %181 = arith.mulf %179, %180 : vector<8x128xf32>
    %182 = vector.broadcast %41 : vector<1x128xf32> to vector<8x128xf32>
    %183 = arith.addf %181, %182 : vector<8x128xf32>
    %184 = vector.extract_strided_slice %183 {offsets = [0, 0], sizes = [8, 32], strides = [1, 1]} : vector<8x128xf32> to vector<8x32xf32>
    %185 = vector.extract_strided_slice %183 {offsets = [0, 32], sizes = [8, 32], strides = [1, 1]} : vector<8x128xf32> to vector<8x32xf32>
    %186 = vector.extract_strided_slice %183 {offsets = [0, 64], sizes = [8, 32], strides = [1, 1]} : vector<8x128xf32> to vector<8x32xf32>
    %187 = vector.extract_strided_slice %183 {offsets = [0, 96], sizes = [8, 32], strides = [1, 1]} : vector<8x128xf32> to vector<8x32xf32>
    %188 = arith.mulf %185, %148 : vector<8x32xf32>
    %189 = arith.mulf %184, %186 : vector<8x32xf32>
    %190 = arith.addf %188, %189 : vector<8x32xf32>
    %191 = math.tanh %190 : vector<8x32xf32>
    %192 = arith.mulf %187, %191 : vector<8x32xf32>
    %193 = arith.truncf %192 : vector<8x32xf32> to vector<8x32xbf16>
    %cst_62 = arith.constant dense<0.000000e+00> : vector<8x256xf32>
    %194 = tpu.matmul %193, %43, %cst_62 {dimension_numbers = #tpu.dot_dimension_numbers<[1], [0], [0], [1], [0, 0, 1, 1], [], []>} : vector<8x32xbf16>, vector<32x256xbf16>, vector<8x256xf32> -> vector<8x256xf32>
    %195 = vector.extract_strided_slice %194 {offsets = [0, 0], sizes = [8, 128], strides = [1, 1]} : vector<8x256xf32> to vector<8x128xf32>
    %196 = vector.extract_strided_slice %194 {offsets = [0, 128], sizes = [8, 128], strides = [1, 1]} : vector<8x256xf32> to vector<8x128xf32>
    %197 = vector.broadcast %44 : vector<1x128xf32> to vector<8x128xf32>
    %198 = arith.addf %196, %197 : vector<8x128xf32>
    %c3 = arith.constant 3 : index
    %c0_63 = arith.constant 0 : index
    %c0_64 = arith.constant 0 : index
    %199 = vector.load %arg9[%c3, %c0_63, %c0_64] : memref<8x8x128xf32, #tpu.memory_space<vmem>>, vector<1x8x128xf32>
    %200 = vector.shape_cast %199 : vector<1x8x128xf32> to vector<8x128xf32>
    %201 = vector.shape_cast %198 : vector<8x128xf32> to vector<1x8x128xf32>
    tpu.vector_store %arg9[%c3, %c0_63, %c0_64], %201 {strides = array<i32>} : memref<8x8x128xf32, #tpu.memory_space<vmem>>, vector<1x8x128xf32>,
    %cst_65 = arith.constant dense<0xFF800000> : vector<8xf32>
    %202 = vector.multi_reduction <maximumf>, %198, %cst_65 [1] : vector<8x128xf32> to vector<8xf32>
    %203 = vector.shape_cast %202 : vector<8xf32> to vector<8x1xf32>
    %204 = vector.broadcast %203 : vector<8x1xf32> to vector<8x128xf32>
    %205 = arith.cmpf oeq, %198, %204 : vector<8x128xf32>
    %c128_i32_66 = arith.constant 128 : i32
    %206 = vector.broadcast %c128_i32_66 : i32 to vector<8x128xi32>
    %207 = arith.select %205, %17, %206 : vector<8x128xi1>, vector<8x128xi32>
    %cst_67 = arith.constant dense<2147483647> : vector<8xi32>
    %208 = vector.multi_reduction <minsi>, %207, %cst_67 [1] : vector<8x128xi32> to vector<8xi32>
    %209 = vector.shape_cast %208 : vector<8xi32> to vector<8x1xi32>
    %210 = vector.broadcast %209 : vector<8x1xi32> to vector<8x128xi32>
    %211 = arith.cmpi eq, %17, %210 : vector<8x128xi32>
    %cst_68 = arith.constant 1.000000e+00 : f32
    %cst_69 = arith.constant 0.000000e+00 : f32
    %212 = vector.broadcast %cst_68 : f32 to vector<8x128xf32>
    %213 = vector.broadcast %cst_69 : f32 to vector<8x128xf32>
    %214 = arith.select %211, %212, %213 : vector<8x128xi1>, vector<8x128xf32>
    %215 = arith.truncf %214 : vector<8x128xf32> to vector<8x128xbf16>
    %cst_70 = arith.constant dense<0.000000e+00> : vector<8x128xf32>
    %216 = tpu.matmul %215, %42, %cst_70 {dimension_numbers = #tpu.dot_dimension_numbers<[1], [0], [0], [1], [0, 0, 1, 1], [], []>} : vector<8x128xbf16>, vector<128x128xbf16>, vector<8x128xf32> -> vector<8x128xf32>
    %217 = arith.addf %216, %195 : vector<8x128xf32>
    %218 = arith.addf %217, %29 : vector<8x128xf32>
    %219 = vector.broadcast %38 : vector<1x128xf32> to vector<8x128xf32>
    %220 = arith.mulf %218, %219 : vector<8x128xf32>
    %221 = math.tanh %220 : vector<8x128xf32>
    %222 = vector.broadcast %38 : vector<1x128xf32> to vector<8x128xf32>
    %223 = arith.mulf %221, %222 : vector<8x128xf32>
    %224 = vector.broadcast %41 : vector<1x128xf32> to vector<8x128xf32>
    %225 = arith.addf %223, %224 : vector<8x128xf32>
    %226 = vector.extract_strided_slice %225 {offsets = [0, 0], sizes = [8, 32], strides = [1, 1]} : vector<8x128xf32> to vector<8x32xf32>
    %227 = vector.extract_strided_slice %225 {offsets = [0, 32], sizes = [8, 32], strides = [1, 1]} : vector<8x128xf32> to vector<8x32xf32>
    %228 = vector.extract_strided_slice %225 {offsets = [0, 64], sizes = [8, 32], strides = [1, 1]} : vector<8x128xf32> to vector<8x32xf32>
    %229 = vector.extract_strided_slice %225 {offsets = [0, 96], sizes = [8, 32], strides = [1, 1]} : vector<8x128xf32> to vector<8x32xf32>
    %230 = arith.mulf %227, %190 : vector<8x32xf32>
    %231 = arith.mulf %226, %228 : vector<8x32xf32>
    %232 = arith.addf %230, %231 : vector<8x32xf32>
    %233 = math.tanh %232 : vector<8x32xf32>
    %234 = arith.mulf %229, %233 : vector<8x32xf32>
    %235 = arith.truncf %234 : vector<8x32xf32> to vector<8x32xbf16>
    %cst_71 = arith.constant dense<0.000000e+00> : vector<8x256xf32>
    %236 = tpu.matmul %235, %43, %cst_71 {dimension_numbers = #tpu.dot_dimension_numbers<[1], [0], [0], [1], [0, 0, 1, 1], [], []>} : vector<8x32xbf16>, vector<32x256xbf16>, vector<8x256xf32> -> vector<8x256xf32>
    %237 = vector.extract_strided_slice %236 {offsets = [0, 0], sizes = [8, 128], strides = [1, 1]} : vector<8x256xf32> to vector<8x128xf32>
    %238 = vector.extract_strided_slice %236 {offsets = [0, 128], sizes = [8, 128], strides = [1, 1]} : vector<8x256xf32> to vector<8x128xf32>
    %239 = vector.broadcast %44 : vector<1x128xf32> to vector<8x128xf32>
    %240 = arith.addf %238, %239 : vector<8x128xf32>
    %c4 = arith.constant 4 : index
    %c0_72 = arith.constant 0 : index
    %c0_73 = arith.constant 0 : index
    %241 = vector.load %arg9[%c4, %c0_72, %c0_73] : memref<8x8x128xf32, #tpu.memory_space<vmem>>, vector<1x8x128xf32>
    %242 = vector.shape_cast %241 : vector<1x8x128xf32> to vector<8x128xf32>
    %243 = vector.shape_cast %240 : vector<8x128xf32> to vector<1x8x128xf32>
    tpu.vector_store %arg9[%c4, %c0_72, %c0_73], %243 {strides = array<i32>} : memref<8x8x128xf32, #tpu.memory_space<vmem>>, vector<1x8x128xf32>,
    %cst_74 = arith.constant dense<0xFF800000> : vector<8xf32>
    %244 = vector.multi_reduction <maximumf>, %240, %cst_74 [1] : vector<8x128xf32> to vector<8xf32>
    %245 = vector.shape_cast %244 : vector<8xf32> to vector<8x1xf32>
    %246 = vector.broadcast %245 : vector<8x1xf32> to vector<8x128xf32>
    %247 = arith.cmpf oeq, %240, %246 : vector<8x128xf32>
    %c128_i32_75 = arith.constant 128 : i32
    %248 = vector.broadcast %c128_i32_75 : i32 to vector<8x128xi32>
    %249 = arith.select %247, %17, %248 : vector<8x128xi1>, vector<8x128xi32>
    %cst_76 = arith.constant dense<2147483647> : vector<8xi32>
    %250 = vector.multi_reduction <minsi>, %249, %cst_76 [1] : vector<8x128xi32> to vector<8xi32>
    %251 = vector.shape_cast %250 : vector<8xi32> to vector<8x1xi32>
    %252 = vector.broadcast %251 : vector<8x1xi32> to vector<8x128xi32>
    %253 = arith.cmpi eq, %17, %252 : vector<8x128xi32>
    %cst_77 = arith.constant 1.000000e+00 : f32
    %cst_78 = arith.constant 0.000000e+00 : f32
    %254 = vector.broadcast %cst_77 : f32 to vector<8x128xf32>
    %255 = vector.broadcast %cst_78 : f32 to vector<8x128xf32>
    %256 = arith.select %253, %254, %255 : vector<8x128xi1>, vector<8x128xf32>
    %257 = arith.truncf %256 : vector<8x128xf32> to vector<8x128xbf16>
    %cst_79 = arith.constant dense<0.000000e+00> : vector<8x128xf32>
    %258 = tpu.matmul %257, %42, %cst_79 {dimension_numbers = #tpu.dot_dimension_numbers<[1], [0], [0], [1], [0, 0, 1, 1], [], []>} : vector<8x128xbf16>, vector<128x128xbf16>, vector<8x128xf32> -> vector<8x128xf32>
    %259 = arith.addf %258, %237 : vector<8x128xf32>
    %260 = arith.addf %259, %29 : vector<8x128xf32>
    %261 = vector.broadcast %38 : vector<1x128xf32> to vector<8x128xf32>
    %262 = arith.mulf %260, %261 : vector<8x128xf32>
    %263 = math.tanh %262 : vector<8x128xf32>
    %264 = vector.broadcast %38 : vector<1x128xf32> to vector<8x128xf32>
    %265 = arith.mulf %263, %264 : vector<8x128xf32>
    %266 = vector.broadcast %41 : vector<1x128xf32> to vector<8x128xf32>
    %267 = arith.addf %265, %266 : vector<8x128xf32>
    %268 = vector.extract_strided_slice %267 {offsets = [0, 0], sizes = [8, 32], strides = [1, 1]} : vector<8x128xf32> to vector<8x32xf32>
    %269 = vector.extract_strided_slice %267 {offsets = [0, 32], sizes = [8, 32], strides = [1, 1]} : vector<8x128xf32> to vector<8x32xf32>
    %270 = vector.extract_strided_slice %267 {offsets = [0, 64], sizes = [8, 32], strides = [1, 1]} : vector<8x128xf32> to vector<8x32xf32>
    %271 = vector.extract_strided_slice %267 {offsets = [0, 96], sizes = [8, 32], strides = [1, 1]} : vector<8x128xf32> to vector<8x32xf32>
    %272 = arith.mulf %269, %232 : vector<8x32xf32>
    %273 = arith.mulf %268, %270 : vector<8x32xf32>
    %274 = arith.addf %272, %273 : vector<8x32xf32>
    %275 = math.tanh %274 : vector<8x32xf32>
    %276 = arith.mulf %271, %275 : vector<8x32xf32>
    %277 = arith.truncf %276 : vector<8x32xf32> to vector<8x32xbf16>
    %cst_80 = arith.constant dense<0.000000e+00> : vector<8x256xf32>
    %278 = tpu.matmul %277, %43, %cst_80 {dimension_numbers = #tpu.dot_dimension_numbers<[1], [0], [0], [1], [0, 0, 1, 1], [], []>} : vector<8x32xbf16>, vector<32x256xbf16>, vector<8x256xf32> -> vector<8x256xf32>
    %279 = vector.extract_strided_slice %278 {offsets = [0, 0], sizes = [8, 128], strides = [1, 1]} : vector<8x256xf32> to vector<8x128xf32>
    %280 = vector.extract_strided_slice %278 {offsets = [0, 128], sizes = [8, 128], strides = [1, 1]} : vector<8x256xf32> to vector<8x128xf32>
    %281 = vector.broadcast %44 : vector<1x128xf32> to vector<8x128xf32>
    %282 = arith.addf %280, %281 : vector<8x128xf32>
    %c5 = arith.constant 5 : index
    %c0_81 = arith.constant 0 : index
    %c0_82 = arith.constant 0 : index
    %283 = vector.load %arg9[%c5, %c0_81, %c0_82] : memref<8x8x128xf32, #tpu.memory_space<vmem>>, vector<1x8x128xf32>
    %284 = vector.shape_cast %283 : vector<1x8x128xf32> to vector<8x128xf32>
    %285 = vector.shape_cast %282 : vector<8x128xf32> to vector<1x8x128xf32>
    tpu.vector_store %arg9[%c5, %c0_81, %c0_82], %285 {strides = array<i32>} : memref<8x8x128xf32, #tpu.memory_space<vmem>>, vector<1x8x128xf32>,
    %cst_83 = arith.constant dense<0xFF800000> : vector<8xf32>
    %286 = vector.multi_reduction <maximumf>, %282, %cst_83 [1] : vector<8x128xf32> to vector<8xf32>
    %287 = vector.shape_cast %286 : vector<8xf32> to vector<8x1xf32>
    %288 = vector.broadcast %287 : vector<8x1xf32> to vector<8x128xf32>
    %289 = arith.cmpf oeq, %282, %288 : vector<8x128xf32>
    %c128_i32_84 = arith.constant 128 : i32
    %290 = vector.broadcast %c128_i32_84 : i32 to vector<8x128xi32>
    %291 = arith.select %289, %17, %290 : vector<8x128xi1>, vector<8x128xi32>
    %cst_85 = arith.constant dense<2147483647> : vector<8xi32>
    %292 = vector.multi_reduction <minsi>, %291, %cst_85 [1] : vector<8x128xi32> to vector<8xi32>
    %293 = vector.shape_cast %292 : vector<8xi32> to vector<8x1xi32>
    %294 = vector.broadcast %293 : vector<8x1xi32> to vector<8x128xi32>
    %295 = arith.cmpi eq, %17, %294 : vector<8x128xi32>
    %cst_86 = arith.constant 1.000000e+00 : f32
    %cst_87 = arith.constant 0.000000e+00 : f32
    %296 = vector.broadcast %cst_86 : f32 to vector<8x128xf32>
    %297 = vector.broadcast %cst_87 : f32 to vector<8x128xf32>
    %298 = arith.select %295, %296, %297 : vector<8x128xi1>, vector<8x128xf32>
    %299 = arith.truncf %298 : vector<8x128xf32> to vector<8x128xbf16>
    %cst_88 = arith.constant dense<0.000000e+00> : vector<8x128xf32>
    %300 = tpu.matmul %299, %42, %cst_88 {dimension_numbers = #tpu.dot_dimension_numbers<[1], [0], [0], [1], [0, 0, 1, 1], [], []>} : vector<8x128xbf16>, vector<128x128xbf16>, vector<8x128xf32> -> vector<8x128xf32>
    %301 = arith.addf %300, %279 : vector<8x128xf32>
    %302 = arith.addf %301, %29 : vector<8x128xf32>
    %303 = vector.broadcast %38 : vector<1x128xf32> to vector<8x128xf32>
    %304 = arith.mulf %302, %303 : vector<8x128xf32>
    %305 = math.tanh %304 : vector<8x128xf32>
    %306 = vector.broadcast %38 : vector<1x128xf32> to vector<8x128xf32>
    %307 = arith.mulf %305, %306 : vector<8x128xf32>
    %308 = vector.broadcast %41 : vector<1x128xf32> to vector<8x128xf32>
    %309 = arith.addf %307, %308 : vector<8x128xf32>
    %310 = vector.extract_strided_slice %309 {offsets = [0, 0], sizes = [8, 32], strides = [1, 1]} : vector<8x128xf32> to vector<8x32xf32>
    %311 = vector.extract_strided_slice %309 {offsets = [0, 32], sizes = [8, 32], strides = [1, 1]} : vector<8x128xf32> to vector<8x32xf32>
    %312 = vector.extract_strided_slice %309 {offsets = [0, 64], sizes = [8, 32], strides = [1, 1]} : vector<8x128xf32> to vector<8x32xf32>
    %313 = vector.extract_strided_slice %309 {offsets = [0, 96], sizes = [8, 32], strides = [1, 1]} : vector<8x128xf32> to vector<8x32xf32>
    %314 = arith.mulf %311, %274 : vector<8x32xf32>
    %315 = arith.mulf %310, %312 : vector<8x32xf32>
    %316 = arith.addf %314, %315 : vector<8x32xf32>
    %317 = math.tanh %316 : vector<8x32xf32>
    %318 = arith.mulf %313, %317 : vector<8x32xf32>
    %319 = arith.truncf %318 : vector<8x32xf32> to vector<8x32xbf16>
    %cst_89 = arith.constant dense<0.000000e+00> : vector<8x256xf32>
    %320 = tpu.matmul %319, %43, %cst_89 {dimension_numbers = #tpu.dot_dimension_numbers<[1], [0], [0], [1], [0, 0, 1, 1], [], []>} : vector<8x32xbf16>, vector<32x256xbf16>, vector<8x256xf32> -> vector<8x256xf32>
    %321 = vector.extract_strided_slice %320 {offsets = [0, 0], sizes = [8, 128], strides = [1, 1]} : vector<8x256xf32> to vector<8x128xf32>
    %322 = vector.extract_strided_slice %320 {offsets = [0, 128], sizes = [8, 128], strides = [1, 1]} : vector<8x256xf32> to vector<8x128xf32>
    %323 = vector.broadcast %44 : vector<1x128xf32> to vector<8x128xf32>
    %324 = arith.addf %322, %323 : vector<8x128xf32>
    %c6 = arith.constant 6 : index
    %c0_90 = arith.constant 0 : index
    %c0_91 = arith.constant 0 : index
    %325 = vector.load %arg9[%c6, %c0_90, %c0_91] : memref<8x8x128xf32, #tpu.memory_space<vmem>>, vector<1x8x128xf32>
    %326 = vector.shape_cast %325 : vector<1x8x128xf32> to vector<8x128xf32>
    %327 = vector.shape_cast %324 : vector<8x128xf32> to vector<1x8x128xf32>
    tpu.vector_store %arg9[%c6, %c0_90, %c0_91], %327 {strides = array<i32>} : memref<8x8x128xf32, #tpu.memory_space<vmem>>, vector<1x8x128xf32>,
    %cst_92 = arith.constant dense<0xFF800000> : vector<8xf32>
    %328 = vector.multi_reduction <maximumf>, %324, %cst_92 [1] : vector<8x128xf32> to vector<8xf32>
    %329 = vector.shape_cast %328 : vector<8xf32> to vector<8x1xf32>
    %330 = vector.broadcast %329 : vector<8x1xf32> to vector<8x128xf32>
    %331 = arith.cmpf oeq, %324, %330 : vector<8x128xf32>
    %c128_i32_93 = arith.constant 128 : i32
    %332 = vector.broadcast %c128_i32_93 : i32 to vector<8x128xi32>
    %333 = arith.select %331, %17, %332 : vector<8x128xi1>, vector<8x128xi32>
    %cst_94 = arith.constant dense<2147483647> : vector<8xi32>
    %334 = vector.multi_reduction <minsi>, %333, %cst_94 [1] : vector<8x128xi32> to vector<8xi32>
    %335 = vector.shape_cast %334 : vector<8xi32> to vector<8x1xi32>
    %336 = vector.broadcast %335 : vector<8x1xi32> to vector<8x128xi32>
    %337 = arith.cmpi eq, %17, %336 : vector<8x128xi32>
    %cst_95 = arith.constant 1.000000e+00 : f32
    %cst_96 = arith.constant 0.000000e+00 : f32
    %338 = vector.broadcast %cst_95 : f32 to vector<8x128xf32>
    %339 = vector.broadcast %cst_96 : f32 to vector<8x128xf32>
    %340 = arith.select %337, %338, %339 : vector<8x128xi1>, vector<8x128xf32>
    %341 = arith.truncf %340 : vector<8x128xf32> to vector<8x128xbf16>
    %cst_97 = arith.constant dense<0.000000e+00> : vector<8x128xf32>
    %342 = tpu.matmul %341, %42, %cst_97 {dimension_numbers = #tpu.dot_dimension_numbers<[1], [0], [0], [1], [0, 0, 1, 1], [], []>} : vector<8x128xbf16>, vector<128x128xbf16>, vector<8x128xf32> -> vector<8x128xf32>
    %343 = arith.addf %342, %321 : vector<8x128xf32>
    %344 = arith.addf %343, %29 : vector<8x128xf32>
    %345 = vector.broadcast %38 : vector<1x128xf32> to vector<8x128xf32>
    %346 = arith.mulf %344, %345 : vector<8x128xf32>
    %347 = math.tanh %346 : vector<8x128xf32>
    %348 = vector.broadcast %38 : vector<1x128xf32> to vector<8x128xf32>
    %349 = arith.mulf %347, %348 : vector<8x128xf32>
    %350 = vector.broadcast %41 : vector<1x128xf32> to vector<8x128xf32>
    %351 = arith.addf %349, %350 : vector<8x128xf32>
    %352 = vector.extract_strided_slice %351 {offsets = [0, 0], sizes = [8, 32], strides = [1, 1]} : vector<8x128xf32> to vector<8x32xf32>
    %353 = vector.extract_strided_slice %351 {offsets = [0, 32], sizes = [8, 32], strides = [1, 1]} : vector<8x128xf32> to vector<8x32xf32>
    %354 = vector.extract_strided_slice %351 {offsets = [0, 64], sizes = [8, 32], strides = [1, 1]} : vector<8x128xf32> to vector<8x32xf32>
    %355 = vector.extract_strided_slice %351 {offsets = [0, 96], sizes = [8, 32], strides = [1, 1]} : vector<8x128xf32> to vector<8x32xf32>
    %356 = arith.mulf %353, %316 : vector<8x32xf32>
    %357 = arith.mulf %352, %354 : vector<8x32xf32>
    %358 = arith.addf %356, %357 : vector<8x32xf32>
    %359 = math.tanh %358 : vector<8x32xf32>
    %360 = arith.mulf %355, %359 : vector<8x32xf32>
    %361 = arith.truncf %360 : vector<8x32xf32> to vector<8x32xbf16>
    %362 = vector.extract_strided_slice %43 {offsets = [0, 128], sizes = [32, 128], strides = [1, 1]} : vector<32x256xbf16> to vector<32x128xbf16>
    %cst_98 = arith.constant dense<0.000000e+00> : vector<8x128xf32>
    %363 = tpu.matmul %361, %362, %cst_98 {dimension_numbers = #tpu.dot_dimension_numbers<[1], [0], [0], [1], [0, 0, 1, 1], [], []>} : vector<8x32xbf16>, vector<32x128xbf16>, vector<8x128xf32> -> vector<8x128xf32>
    %364 = vector.broadcast %44 : vector<1x128xf32> to vector<8x128xf32>
    %365 = arith.addf %363, %364 : vector<8x128xf32>
    %c7 = arith.constant 7 : index
    %c0_99 = arith.constant 0 : index
    %c0_100 = arith.constant 0 : index
    %366 = vector.load %arg9[%c7, %c0_99, %c0_100] : memref<8x8x128xf32, #tpu.memory_space<vmem>>, vector<1x8x128xf32>
    %367 = vector.shape_cast %366 : vector<1x8x128xf32> to vector<8x128xf32>
    %368 = vector.shape_cast %365 : vector<8x128xf32> to vector<1x8x128xf32>
    tpu.vector_store %arg9[%c7, %c0_99, %c0_100], %368 {strides = array<i32>} : memref<8x8x128xf32, #tpu.memory_space<vmem>>, vector<1x8x128xf32>,
    return
  }
}

</mosaic_0001>

<llo_original>
// kernel: tpu_custom_call.1
$region0: #{tpu_custom_call.1}
  #allocation0 [shape = 'u32[]', space=smem, size = 0x4, offset = 0x4, fixed_abs, tag = 'smem constant byte address 0x4 - core index']
  #allocation1 [shape = 'u32[144,128]{1,0:T(1,128)}', space=vmem, size = 0x12000, scoped, tag = 'internal scratch']
  %s0 = inlined_call_operand.vmem [shape: f32[8,32], index: 0, kind: input, shape index: {}]
  %s1 = inlined_call_operand.vmem [shape: s32[8,1], index: 1, kind: input, shape index: {}]
  %s2 = inlined_call_operand.hbm [shape: bf16[128,128], index: 2, kind: input, shape index: {}]
  %s3 = inlined_call_operand.hbm [shape: f32[32,128], index: 3, kind: input, shape index: {}]
  %s4 = inlined_call_operand.hbm [shape: bf16[32,256], index: 4, kind: input, shape index: {}]
  %s5 = inlined_call_operand.vmem [shape: f32[1,128], index: 5, kind: input, shape index: {}]
  %s6 = inlined_call_operand.hbm [shape: f32[2,32,32], index: 6, kind: input, shape index: {}]
  %s7 = inlined_call_operand.vmem [shape: f32[2,1,32], index: 7, kind: input, shape index: {}]
  %s8 = inlined_call_operand.vmem [shape: f32[1,128], index: 8, kind: input, shape index: {}]
  %s9 = inlined_call_operand.hbm [shape: f32[8,8,128], index: 9, kind: output, shape index: {}]
  %s10 = sld [smem:[#allocation0]]
  $region62: #{tpu_custom_call.1} parent=0
    _
  %s12 = ssub.s32 1, %s10
  %s13 = scalar_select 0, %s12, %s10
  $region1: #{tpu_custom_call.1} parent=0
    #allocation2 [shape = 'u8[32768]{0}', space=vmem, size = 0x8000, scoped, tag = 'input window, operand 2, single buffered']
    #allocation3 [shape = 's32[1]{0}', space=sflag, size = 0x4, scoped, tag = 'scoped memory for tpu_custom_call.1']
    #allocation4 [shape = 's32[1]{0}', space=sflag, size = 0x4, scoped, tag = 'scoped memory for tpu_custom_call.1']
    #allocation5 [shape = 'u8[16384]{0}', space=vmem, size = 0x4000, scoped, tag = 'input window, operand 3, single buffered']
    #allocation6 [shape = 's32[1]{0}', space=sflag, size = 0x4, scoped, tag = 'scoped memory for tpu_custom_call.1']
    #allocation7 [shape = 'u8[16384]{0}', space=vmem, size = 0x4000, scoped, tag = 'input window, operand 4, single buffered']
    #allocation8 [shape = 'u8[32768]{0}', space=vmem, size = 0x8000, scoped, tag = 'input window, operand 6, single buffered']
    #allocation9 [shape = 's32[1]{0}', space=sflag, size = 0x4, scoped, tag = 'scoped memory for tpu_custom_call.1']
    #allocation10 [shape = 'u8[32768]{0}', space=vmem, size = 0x8000, scoped, tag = 'output window, operand 0, single buffered']
    %14 = vsyncpa [#allocation3], 0
    %15 = vsyncpa [#allocation6], 0
    %16 = vsyncpa [#allocation9], 0
    %17 = vsyncpa [#allocation4], 0
    // Predicated region
    $region2: #{tpu_custom_call.1} parent=1 // pred_check
      _
    $region3: #{tpu_custom_call.1} parent=1 // pred_check_branch
      %19 = sbr.rel (0) target = $region5
    $region4: #{tpu_custom_call.1} parent=1 // pred_region
      _
    $region5: #{tpu_custom_call.1} parent=1 // pred_fallthru
      _
    // Predicated region
    $region6: #{tpu_custom_call.1} parent=1 // pred_check
      _
    $region7: #{tpu_custom_call.1} parent=1 // pred_check_branch
      %21 = sbr.rel (0) target = $region9
    $region8: #{tpu_custom_call.1} parent=1 // pred_region
      _
    $region9: #{tpu_custom_call.1} parent=1 // pred_fallthru
      _
    // Predicated region
    $region10: #{tpu_custom_call.1} parent=1 // pred_check
      _
    $region11: #{tpu_custom_call.1} parent=1 // pred_check_branch
      %23 = sbr.rel (0) target = $region13
    $region12: #{tpu_custom_call.1} parent=1 // pred_region
      %s25 = ssub.s32 1024, 1024
      %26 = vsyncadd [#allocation3], %s25
      %s27 = sshll.u32 [#allocation2], 4
      %s28 = int_to_ptr.vmem [resolvable:$true] %s27
      %33 = dma.hbm_to_vmem [thread:$0]  %s2, 1024, %s28, [#allocation3], 64, 64, 4
    $region13: #{tpu_custom_call.1} parent=1 // pred_fallthru
      _
    // Predicated region
    $region14: #{tpu_custom_call.1} parent=1 // pred_check
      _
    $region15: #{tpu_custom_call.1} parent=1 // pred_check_branch
      %35 = sbr.rel (0) target = $region17
    $region16: #{tpu_custom_call.1} parent=1 // pred_region
      %s37 = ssub.s32 512, 512
      %38 = vsyncadd [#allocation6], %s37
      %s39 = sshll.u32 [#allocation5], 4
      %s40 = int_to_ptr.vmem [resolvable:$true] %s39
      %45 = dma.hbm_to_vmem [thread:$0]  %s3, 512, %s40, [#allocation6], 128, 128, 8
    $region17: #{tpu_custom_call.1} parent=1 // pred_fallthru
      _
    // Predicated region
    $region18: #{tpu_custom_call.1} parent=1 // pred_check
      _
    $region19: #{tpu_custom_call.1} parent=1 // pred_check_branch
      %47 = sbr.rel (0) target = $region21
    $region20: #{tpu_custom_call.1} parent=1 // pred_region
      %s49 = ssub.s32 512, 512
      %50 = vsyncadd [#allocation6], %s49
      %s51 = sshll.u32 [#allocation7], 4
      %s52 = int_to_ptr.vmem [resolvable:$true] %s51
      %57 = dma.hbm_to_vmem [thread:$0]  %s4, 512, %s52, [#allocation6], 128, 128, 8
    $region21: #{tpu_custom_call.1} parent=1 // pred_fallthru
      _
    // Predicated region
    $region22: #{tpu_custom_call.1} parent=1 // pred_check
      _
    $region23: #{tpu_custom_call.1} parent=1 // pred_check_branch
      %59 = sbr.rel (0) target = $region25
    $region24: #{tpu_custom_call.1} parent=1 // pred_region
      _
    $region25: #{tpu_custom_call.1} parent=1 // pred_fallthru
      _
    // Predicated region
    $region26: #{tpu_custom_call.1} parent=1 // pred_check
      _
    $region27: #{tpu_custom_call.1} parent=1 // pred_check_branch
      %61 = sbr.rel (0) target = $region29
    $region28: #{tpu_custom_call.1} parent=1 // pred_region
      %s63 = ssub.s32 1024, 1024
      %64 = vsyncadd [#allocation9], %s63
      %s65 = sshll.u32 [#allocation8], 4
      %s66 = int_to_ptr.vmem [resolvable:$true] %s65
      %71 = dma.hbm_to_vmem [thread:$0]  %s6, 1024, %s66, [#allocation9], 128, 128, 8
    $region29: #{tpu_custom_call.1} parent=1 // pred_fallthru
      _
    // Predicated region
    $region30: #{tpu_custom_call.1} parent=1 // pred_check
      _
    $region31: #{tpu_custom_call.1} parent=1 // pred_check_branch
      %73 = sbr.rel (0) target = $region33
    $region32: #{tpu_custom_call.1} parent=1 // pred_region
      _
    $region33: #{tpu_custom_call.1} parent=1 // pred_fallthru
      _
    // Predicated region
    $region34: #{tpu_custom_call.1} parent=1 // pred_check
      _
    $region35: #{tpu_custom_call.1} parent=1 // pred_check_branch
      %75 = sbr.rel (0) target = $region37
    $region36: #{tpu_custom_call.1} parent=1 // pred_region
      _
    $region37: #{tpu_custom_call.1} parent=1 // pred_fallthru
      _
    // Predicated region
    $region38: #{tpu_custom_call.1} parent=1 // pred_check
      _
    $region39: #{tpu_custom_call.1} parent=1 // pred_check_branch
      %77 = sbr.rel (0) target = $region41
    $region40: #{tpu_custom_call.1} parent=1 // pred_region
      %78 = dma.done [#allocation3], 1024
    $region41: #{tpu_custom_call.1} parent=1 // pred_fallthru
      _
    // Predicated region
    $region42: #{tpu_custom_call.1} parent=1 // pred_check
      _
    $region43: #{tpu_custom_call.1} parent=1 // pred_check_branch
      %80 = sbr.rel (0) target = $region45
    $region44: #{tpu_custom_call.1} parent=1 // pred_region
      %81 = dma.done [#allocation6], 512
    $region45: #{tpu_custom_call.1} parent=1 // pred_fallthru
      _
    // Predicated region
    $region46: #{tpu_custom_call.1} parent=1 // pred_check
      _
    $region47: #{tpu_custom_call.1} parent=1 // pred_check_branch
      %83 = sbr.rel (0) target = $region49
    $region48: #{tpu_custom_call.1} parent=1 // pred_region
      %84 = dma.done [#allocation6], 512
    $region49: #{tpu_custom_call.1} parent=1 // pred_fallthru
      _
    // Predicated region
    $region50: #{tpu_custom_call.1} parent=1 // pred_check
      _
    $region51: #{tpu_custom_call.1} parent=1 // pred_check_branch
      %86 = sbr.rel (0) target = $region53
    $region52: #{tpu_custom_call.1} parent=1 // pred_region
      %87 = dma.done [#allocation9], 1024
    $region53: #{tpu_custom_call.1} parent=1 // pred_fallthru
      _
    %v89 = vld [vmem:[%s0] sm:$0xff]
    %v90 = vld [vmem:[#allocation8] sm:$0xff]
    %v91 = vld [vmem:[#allocation8 + $0x8] sm:$0xff]
    %v92 = vld [vmem:[#allocation8 + $0x10] sm:$0xff]
    %v93 = vld [vmem:[#allocation8 + $0x18] sm:$0xff]
    %v94 = vld [vmem:[%s7] sm:$0x1]
    %v96 = vlaneseq
    %v97 = vshrl.u32 %v96, 7
    %v98 = vsub.s32 0, %v97
    %v99 = vrot.slane %v94, %v98
    %vm101 = vcmask 261120
    %v103 = vsel %vm101, %v89, 0
    %105 = vmatprep.subr.mxu0 0.0
    %106 = vmatpush1.msra.mxu0 0.0
    %107 = vmatprep.subr.mxu0 0.0
    %108 = vmatpush1.msra.mxu0 0.0
    %109 = vmatprep.subr.mxu0 0.0
    %110 = vmatpush1.msra.mxu0 0.0
    %111 = vmatprep.subr.mxu0 0.0
    %112 = vmatpush1.msra.mxu0 0.0
    %113 = vmatprep.subr.mxu0 0.0
    %114 = vmatpush1.msra.mxu0 0.0
    %115 = vmatprep.subr.mxu0 0.0
    %116 = vmatpush1.msra.mxu0 0.0
    %117 = vmatprep.subr.mxu0 0.0
    %118 = vmatpush1.msra.mxu0 0.0
    %119 = vmatprep.subr.mxu0 0.0
    %120 = vmatpush1.msra.mxu0 0.0
    %121 = vmatprep.subr.mxu0 0.0
    %122 = vmatpush1.msra.mxu0 0.0
    %123 = vmatprep.subr.mxu0 0.0
    %124 = vmatpush1.msra.mxu0 0.0
    %125 = vmatprep.subr.mxu0 0.0
    %126 = vmatpush1.msra.mxu0 0.0
    %127 = vmatprep.subr.mxu0 0.0
    %128 = vmatpush1.msra.mxu0 0.0
    %129 = vmatprep.subr.mxu0 0.0
    %130 = vmatpush1.msra.mxu0 %v93
    %131 = vmatprep.subr.mxu0 0.0
    %132 = vmatpush1.msra.mxu0 %v92
    %133 = vmatprep.subr.mxu0 0.0
    %134 = vmatpush1.msra.mxu0 %v91
    %135 = vmatprep.subr.mxu0 0.0
    %136 = vmatpush1.msra.mxu0 %v90
    %137 = vmatprep.subr.mxu0 0.0
    %138 = vmatpush2.msra.mxu0 0.0
    %139 = vmatprep.subr.mxu0 0.0
    %140 = vmatpush2.msra.mxu0 0.0
    %141 = vmatprep.subr.mxu0 0.0
    %142 = vmatpush2.msra.mxu0 0.0
    %143 = vmatprep.subr.mxu0 0.0
    %144 = vmatpush2.msra.mxu0 0.0
    %145 = vmatprep.subr.mxu0 0.0
    %146 = vmatpush2.msra.mxu0 0.0
    %147 = vmatprep.subr.mxu0 0.0
    %148 = vmatpush2.msra.mxu0 0.0
    %149 = vmatprep.subr.mxu0 0.0
    %150 = vmatpush2.msra.mxu0 0.0
    %151 = vmatprep.subr.mxu0 0.0
    %152 = vmatpush2.msra.mxu0 0.0
    %153 = vmatprep.subr.mxu0 0.0
    %154 = vmatpush2.msra.mxu0 0.0
    %155 = vmatprep.subr.mxu0 0.0
    %156 = vmatpush2.msra.mxu0 0.0
    %157 = vmatprep.subr.mxu0 0.0
    %158 = vmatpush2.msra.mxu0 0.0
    %159 = vmatprep.subr.mxu0 0.0
    %160 = vmatpush2.msra.mxu0 0.0
    %161 = vmatprep.subr.mxu0 0.0
    %162 = vmatpush2.msra.mxu0 0.0
    %163 = vmatprep.subr.mxu0 0.0
    %164 = vmatpush2.msra.mxu0 0.0
    %165 = vmatprep.subr.mxu0 0.0
    %166 = vmatpush2.msra.mxu0 0.0
    %167 = vmatprep.subr.mxu0 0.0
    %168 = vmatpush2.msra.mxu0 0.0
    %169 = vmatprep.mubr.f32.mxu0 0.0
    %170 = vmatmul.mubr.f32.gmra.mxu0 %v103
    %v171 = vpop.f32.mrf.mxu0
    %v172 = vadd.f32 %v99, %v171
    %v173 = vpop.f32.mrf.mxu0
    %174 = vdwg.mxu0
    %v175 = vtanh.pop %v172
    %s176 = scalar_lea.vmem [#allocation8], 32
    %v177 = vld [vmem:[%s176] sm:$0xff]
    %v178 = vld [vmem:[%s176 + $0x8] sm:$0xff]
    %v179 = vld [vmem:[%s176 + $0x10] sm:$0xff]
    %v180 = vld [vmem:[%s176 + $0x18] sm:$0xff]
    %s181 = scalar_lea.vmem %s7, 1
    %v182 = vld [vmem:[%s181] sm:$0x1]
    %v184 = vlaneseq
    %v185 = vshrl.u32 %v184, 7
    %v186 = vsub.s32 0, %v185
    %v187 = vrot.slane %v182, %v186
    %189 = vmatprep.subr.mxu0 0.0
    %190 = vmatpush1.msra.mxu0 0.0
    %191 = vmatprep.subr.mxu0 0.0
    %192 = vmatpush1.msra.mxu0 0.0
    %193 = vmatprep.subr.mxu0 0.0
    %194 = vmatpush1.msra.mxu0 0.0
    %195 = vmatprep.subr.mxu0 0.0
    %196 = vmatpush1.msra.mxu0 0.0
    %197 = vmatprep.subr.mxu0 0.0
    %198 = vmatpush1.msra.mxu0 0.0
    %199 = vmatprep.subr.mxu0 0.0
    %200 = vmatpush1.msra.mxu0 0.0
    %201 = vmatprep.subr.mxu0 0.0
    %202 = vmatpush1.msra.mxu0 0.0
    %203 = vmatprep.subr.mxu0 0.0
    %204 = vmatpush1.msra.mxu0 0.0
    %205 = vmatprep.subr.mxu0 0.0
    %206 = vmatpush1.msra.mxu0 0.0
    %207 = vmatprep.subr.mxu0 0.0
    %208 = vmatpush1.msra.mxu0 0.0
    %209 = vmatprep.subr.mxu0 0.0
    %210 = vmatpush1.msra.mxu0 0.0
    %211 = vmatprep.subr.mxu0 0.0
    %212 = vmatpush1.msra.mxu0 0.0
    %213 = vmatprep.subr.mxu0 0.0
    %214 = vmatpush1.msra.mxu0 %v180
    %215 = vmatprep.subr.mxu0 0.0
    %216 = vmatpush1.msra.mxu0 %v179
    %217 = vmatprep.subr.mxu0 0.0
    %218 = vmatpush1.msra.mxu0 %v178
    %219 = vmatprep.subr.mxu0 0.0
    %220 = vmatpush1.msra.mxu0 %v177
    %221 = vmatprep.subr.mxu0 0.0
    %222 = vmatpush2.msra.mxu0 0.0
    %223 = vmatprep.subr.mxu0 0.0
    %224 = vmatpush2.msra.mxu0 0.0
    %225 = vmatprep.subr.mxu0 0.0
    %226 = vmatpush2.msra.mxu0 0.0
    %227 = vmatprep.subr.mxu0 0.0
    %228 = vmatpush2.msra.mxu0 0.0
    %229 = vmatprep.subr.mxu0 0.0
    %230 = vmatpush2.msra.mxu0 0.0
    %231 = vmatprep.subr.mxu0 0.0
    %232 = vmatpush2.msra.mxu0 0.0
    %233 = vmatprep.subr.mxu0 0.0
    %234 = vmatpush2.msra.mxu0 0.0
    %235 = vmatprep.subr.mxu0 0.0
    %236 = vmatpush2.msra.mxu0 0.0
    %237 = vmatprep.subr.mxu0 0.0
    %238 = vmatpush2.msra.mxu0 0.0
    %239 = vmatprep.subr.mxu0 0.0
    %240 = vmatpush2.msra.mxu0 0.0
    %241 = vmatprep.subr.mxu0 0.0
    %242 = vmatpush2.msra.mxu0 0.0
    %243 = vmatprep.subr.mxu0 0.0
    %244 = vmatpush2.msra.mxu0 0.0
    %245 = vmatprep.subr.mxu0 0.0
    %246 = vmatpush2.msra.mxu0 0.0
    %247 = vmatprep.subr.mxu0 0.0
    %248 = vmatpush2.msra.mxu0 0.0
    %249 = vmatprep.subr.mxu0 0.0
    %250 = vmatpush2.msra.mxu0 0.0
    %251 = vmatprep.subr.mxu0 0.0
    %252 = vmatpush2.msra.mxu0 0.0
    %253 = vmatprep.mubr.f32.mxu0 0.0
    %254 = vmatmul.mubr.f32.gmra.mxu0 %v103
    %v255 = vpop.f32.mrf.mxu0
    %v256 = vadd.f32 %v187, %v255
    %v257 = vpop.f32.mrf.mxu0
    %258 = vdwg.mxu0
    %v259 = vtanh.pop %v256
    %v260 = vlaneseq
    %v261 = vand.u32 %v260, 127
    %v262 = vld [vmem:[%s1] sm:$0xff]
    %263 = vset.pattern.permute.xlu0 0
    %264 = vperm.xlu0 %263, %v262
    %v265 = vpop.permute.xlu0 %264
    %vm266 = vcmp.eq.s32.totalorder %v261, %v265
    %v267 = vsel %vm266, 1.0, 0.0
    %v268 = vpack.c.bf16 %v267, %v267
    %v269 = vld [vmem:[#allocation5] sm:$0xff]
    %v270 = vld [vmem:[#allocation5 + $0x8] sm:$0xff]
    %v271 = vld [vmem:[#allocation5 + $0x10] sm:$0xff]
    %v272 = vld [vmem:[#allocation5 + $0x18] sm:$0xff]
    %v273 = vld [vmem:[%s5] sm:$0x1]
    %v275 = vlaneseq
    %v276 = vshrl.u32 %v275, 7
    %v277 = vsub.s32 0, %v276
    %v278 = vrot.slane %v273, %v277
    %280 = vmatprep.subr.mxu0 0.0
    %281 = vmatpush1.msra.mxu0 0.0
    %282 = vmatprep.subr.mxu0 0.0
    %283 = vmatpush1.msra.mxu0 0.0
    %284 = vmatprep.subr.mxu0 0.0
    %285 = vmatpush1.msra.mxu0 0.0
    %286 = vmatprep.subr.mxu0 0.0
    %287 = vmatpush1.msra.mxu0 0.0
    %288 = vmatprep.subr.mxu0 0.0
    %289 = vmatpush1.msra.mxu0 0.0
    %290 = vmatprep.subr.mxu0 0.0
    %291 = vmatpush1.msra.mxu0 0.0
    %292 = vmatprep.subr.mxu0 0.0
    %293 = vmatpush1.msra.mxu0 0.0
    %294 = vmatprep.subr.mxu0 0.0
    %295 = vmatpush1.msra.mxu0 0.0
    %296 = vmatprep.subr.mxu0 0.0
    %297 = vmatpush1.msra.mxu0 0.0
    %298 = vmatprep.subr.mxu0 0.0
    %299 = vmatpush1.msra.mxu0 0.0
    %300 = vmatprep.subr.mxu0 0.0
    %301 = vmatpush1.msra.mxu0 0.0
    %302 = vmatprep.subr.mxu0 0.0
    %303 = vmatpush1.msra.mxu0 0.0
    %304 = vmatprep.subr.mxu0 0.0
    %305 = vmatpush1.msra.mxu0 %v272
    %306 = vmatprep.subr.mxu0 0.0
    %307 = vmatpush1.msra.mxu0 %v271
    %308 = vmatprep.subr.mxu0 0.0
    %309 = vmatpush1.msra.mxu0 %v270
    %310 = vmatprep.subr.mxu0 0.0
    %311 = vmatpush1.msra.mxu0 %v269
    %312 = vmatprep.subr.mxu0 0.0
    %313 = vmatpush2.msra.mxu0 0.0
    %314 = vmatprep.subr.mxu0 0.0
    %315 = vmatpush2.msra.mxu0 0.0
    %316 = vmatprep.subr.mxu0 0.0
    %317 = vmatpush2.msra.mxu0 0.0
    %318 = vmatprep.subr.mxu0 0.0
    %319 = vmatpush2.msra.mxu0 0.0
    %320 = vmatprep.subr.mxu0 0.0
    %321 = vmatpush2.msra.mxu0 0.0
    %322 = vmatprep.subr.mxu0 0.0
    %323 = vmatpush2.msra.mxu0 0.0
    %324 = vmatprep.subr.mxu0 0.0
    %325 = vmatpush2.msra.mxu0 0.0
    %326 = vmatprep.subr.mxu0 0.0
    %327 = vmatpush2.msra.mxu0 0.0
    %328 = vmatprep.subr.mxu0 0.0
    %329 = vmatpush2.msra.mxu0 0.0
    %330 = vmatprep.subr.mxu0 0.0
    %331 = vmatpush2.msra.mxu0 0.0
    %332 = vmatprep.subr.mxu0 0.0
    %333 = vmatpush2.msra.mxu0 0.0
    %334 = vmatprep.subr.mxu0 0.0
    %335 = vmatpush2.msra.mxu0 0.0
    %336 = vmatprep.subr.mxu0 0.0
    %337 = vmatpush2.msra.mxu0 0.0
    %338 = vmatprep.subr.mxu0 0.0
    %339 = vmatpush2.msra.mxu0 0.0
    %340 = vmatprep.subr.mxu0 0.0
    %341 = vmatpush2.msra.mxu0 0.0
    %342 = vmatprep.subr.mxu0 0.0
    %343 = vmatpush2.msra.mxu0 0.0
    %344 = vmatprep.mubr.f32.mxu0 0.0
    %345 = vmatmul.mubr.f32.gmra.mxu0 %v103
    %v346 = vpop.f32.mrf.mxu0
    %v347 = vadd.f32 %v278, %v346
    %v348 = vpop.f32.mrf.mxu0
    %349 = vdwg.mxu0
    %vm350 = vcmp.ge.s32.totalorder %v261, 64
    %vm351 = vcmp.lt.s32.totalorder %v261, 96
    %vm352 = vmand %vm350, %vm351
    %v353 = vsel %vm352, 1.0, 0.5
    %v354 = vsel %vm352, 0.0, 0.5
    %v355 = vld [vmem:[#allocation2] sm:$0xf]
    %v356 = vld [vmem:[#allocation2 + $0x4] sm:$0xf]
    %v357 = vld [vmem:[#allocation2 + $0x8] sm:$0xf]
    %v358 = vld [vmem:[#allocation2 + $0xc] sm:$0xf]
    %v359 = vld [vmem:[#allocation2 + $0x10] sm:$0xf]
    %v360 = vld [vmem:[#allocation2 + $0x14] sm:$0xf]
    %v361 = vld [vmem:[#allocation2 + $0x18] sm:$0xf]
    %v362 = vld [vmem:[#allocation2 + $0x1c] sm:$0xf]
    %v363 = vld [vmem:[#allocation2 + $0x20] sm:$0xf]
    %v364 = vld [vmem:[#allocation2 + $0x24] sm:$0xf]
    %v365 = vld [vmem:[#allocation2 + $0x28] sm:$0xf]
    %v366 = vld [vmem:[#allocation2 + $0x2c] sm:$0xf]
    %v367 = vld [vmem:[#allocation2 + $0x30] sm:$0xf]
    %v368 = vld [vmem:[#allocation2 + $0x34] sm:$0xf]
    %v369 = vld [vmem:[#allocation2 + $0x38] sm:$0xf]
    %v370 = vld [vmem:[#allocation2 + $0x3c] sm:$0xf]
    %v371 = vld [vmem:[#allocation7] sm:$0xff]
    %v372 = vld [vmem:[#allocation7 + $0x8] sm:$0xff]
    %v373 = vld [vmem:[#allocation7 + $0x10] sm:$0xff]
    %v374 = vld [vmem:[#allocation7 + $0x18] sm:$0xff]
    %v375 = vld [vmem:[%s8] sm:$0x1]
    %v376 = vpack.c.bf16 %v175, %v175
    %v381 = vunpack.c.l.b16 %v371
    %v382 = vunpack.c.h.b16 %v371
    %v383 = vunpack.c.l.b16 %v372
    %v384 = vunpack.c.h.b16 %v372
    %v385 = vunpack.c.l.b16 %v373
    %v386 = vunpack.c.h.b16 %v373
    %v387 = vunpack.c.l.b16 %v374
    %v388 = vunpack.c.h.b16 %v374
    %v389 = vpack.c.b16 %v383, %v381
    %v390 = vpack.c.b16 %v384, %v382
    %v391 = vpack.c.b16 %v387, %v385
    %v392 = vpack.c.b16 %v388, %v386
    %v398 = vsel %vm101, %v376, 0
    %400 = vmatprep.subr.bf16.mxu0 0
    %401 = vmatpush1.bf16.msra.mxu0 0
    %402 = vmatprep.subr.bf16.mxu0 0
    %403 = vmatpush1.bf16.msra.mxu0 0
    %404 = vmatprep.subr.bf16.mxu0 0
    %405 = vmatpush1.bf16.msra.mxu0 0
    %406 = vmatprep.subr.bf16.mxu0 0
    %407 = vmatpush1.bf16.msra.mxu0 0
    %408 = vmatprep.subr.bf16.mxu0 0
    %409 = vmatpush1.bf16.msra.mxu0 0
    %410 = vmatprep.subr.bf16.mxu0 0
    %411 = vmatpush1.bf16.msra.mxu0 0
    %412 = vmatprep.subr.bf16.mxu0 %v392
    %413 = vmatpush1.bf16.msra.mxu0 %v391
    %414 = vmatprep.subr.bf16.mxu0 %v390
    %415 = vmatpush1.bf16.msra.mxu0 %v389
    %416 = vmatprep.subr.bf16.mxu0 0
    %417 = vmatpush2.bf16.msra.mxu0 0
    %418 = vmatprep.subr.bf16.mxu0 0
    %419 = vmatpush2.bf16.msra.mxu0 0
    %420 = vmatprep.subr.bf16.mxu0 0
    %421 = vmatpush2.bf16.msra.mxu0 0
    %422 = vmatprep.subr.bf16.mxu0 0
    %423 = vmatpush2.bf16.msra.mxu0 0
    %424 = vmatprep.subr.bf16.mxu0 0
    %425 = vmatpush2.bf16.msra.mxu0 0
    %426 = vmatprep.subr.bf16.mxu0 0
    %427 = vmatpush2.bf16.msra.mxu0 0
    %428 = vmatprep.subr.bf16.mxu0 0
    %429 = vmatpush2.bf16.msra.mxu0 0
    %430 = vmatprep.subr.bf16.mxu0 0
    %431 = vmatpush2.bf16.msra.mxu0 0
    %432 = vmatprep.mubr.bf16.mxu0 0
    %433 = vmatmul.mubr.bf16.gmra.mxu0 %v398
    %v434 = vpop.f32.mrf.mxu0
    %v435 = vadd.f32 0.0, %v434
    %v436 = vpop.f32.mrf.mxu0
    %v437 = vpop.f32.mrf.mxu0
    %v438 = vpop.f32.mrf.mxu0
    %439 = vdwg.mxu0
    %v456 = vunpack.c.l.b16 %v355
    %v457 = vunpack.c.l.b16 %v356
    %v458 = vunpack.c.l.b16 %v357
    %v459 = vunpack.c.l.b16 %v358
    %v460 = vunpack.c.l.b16 %v359
    %v461 = vunpack.c.l.b16 %v360
    %v462 = vunpack.c.l.b16 %v361
    %v463 = vunpack.c.l.b16 %v362
    %v464 = vunpack.c.l.b16 %v363
    %v465 = vunpack.c.l.b16 %v364
    %v466 = vunpack.c.l.b16 %v365
    %v467 = vunpack.c.l.b16 %v366
    %v468 = vunpack.c.l.b16 %v367
    %v469 = vunpack.c.l.b16 %v368
    %v470 = vunpack.c.l.b16 %v369
    %v471 = vunpack.c.l.b16 %v370
    %v472 = vpack.c.b16 %v457, %v456
    %v473 = vpack.c.b16 %v459, %v458
    %v474 = vpack.c.b16 %v461, %v460
    %v475 = vpack.c.b16 %v463, %v462
    %v476 = vpack.c.b16 %v465, %v464
    %v477 = vpack.c.b16 %v467, %v466
    %v478 = vpack.c.b16 %v469, %v468
    %v479 = vpack.c.b16 %v471, %v470
    %488 = vmatprep.subr.bf16.mxu0 0
    %489 = vmatpush1.bf16.msra.mxu0 %v479
    %490 = vmatprep.subr.bf16.mxu0 0
    %491 = vmatpush1.bf16.msra.mxu0 %v478
    %492 = vmatprep.subr.bf16.mxu0 0
    %493 = vmatpush1.bf16.msra.mxu0 %v477
    %494 = vmatprep.subr.bf16.mxu0 0
    %495 = vmatpush1.bf16.msra.mxu0 %v476
    %496 = vmatprep.subr.bf16.mxu0 0
    %497 = vmatpush1.bf16.msra.mxu0 %v475
    %498 = vmatprep.subr.bf16.mxu0 0
    %499 = vmatpush1.bf16.msra.mxu0 %v474
    %500 = vmatprep.subr.bf16.mxu0 0
    %501 = vmatpush1.bf16.msra.mxu0 %v473
    %502 = vmatprep.subr.bf16.mxu0 0
    %503 = vmatpush1.bf16.msra.mxu0 %v472
    %504 = vmatprep.subr.bf16.mxu0 0
    %505 = vmatpush2.bf16.msra.mxu0 0
    %506 = vmatprep.subr.bf16.mxu0 0
    %507 = vmatpush2.bf16.msra.mxu0 0
    %508 = vmatprep.subr.bf16.mxu0 0
    %509 = vmatpush2.bf16.msra.mxu0 0
    %510 = vmatprep.subr.bf16.mxu0 0
    %511 = vmatpush2.bf16.msra.mxu0 0
    %512 = vmatprep.subr.bf16.mxu0 0
    %513 = vmatpush2.bf16.msra.mxu0 0
    %514 = vmatprep.subr.bf16.mxu0 0
    %515 = vmatpush2.bf16.msra.mxu0 0
    %516 = vmatprep.subr.bf16.mxu0 0
    %517 = vmatpush2.bf16.msra.mxu0 0
    %518 = vmatprep.subr.bf16.mxu0 0
    %519 = vmatpush2.bf16.msra.mxu0 0
    %520 = vmatprep.mubr.bf16.mxu0 0
    %521 = vmatmul.mubr.bf16.gmra.mxu0 %v268
    %v522 = vpop.f32.mrf.mxu0
    %v523 = vadd.f32 %v435, %v522
    %v524 = vpop.f32.mrf.mxu0
    %v525 = vpop.f32.mrf.mxu0
    %v526 = vpop.f32.mrf.mxu0
    %527 = vdwg.mxu0
    %v528 = vadd.f32 %v523, %v347
    %v529 = vmul.f32 %v528, %v353
    %v530 = vtanh.pop %v529
    %v531 = vmul.f32 %v530, %v353
    %v532 = vadd.f32 %v531, %v354
    %534 = vrot.lane.b32.xlu0 %v259, 32
    %v535 = vpop.permute.xlu0 %534
    %v537 = vmul.f32 %v532, %v535
    %539 = vrot.lane.b32.xlu0 %v532, 64
    %v540 = vpop.permute.xlu0 %539
    %v542 = vmul.f32 %v532, %v540
    %544 = vrot.lane.b32.xlu0 %v542, 32
    %v545 = vpop.permute.xlu0 %544
    %v547 = vadd.f32 %v537, %v545
    %v548 = vtanh.pop %v547
    %550 = vrot.lane.b32.xlu0 %v548, 64
    %v551 = vpop.permute.xlu0 %550
    %v553 = vmul.f32 %v532, %v551
    %v554 = vpack.c.bf16 %v553, %v553
    %556 = vrot.lane.b32.xlu0 %v554, 32
    %v557 = vpop.permute.xlu0 %556
    %v559 = vsel %vm101, %v557, 0
    %561 = vmatprep.subr.bf16.mxu0 0
    %562 = vmatpush1.bf16.msra.mxu0 0
    %563 = vmatprep.subr.bf16.mxu0 0
    %564 = vmatpush1.bf16.msra.mxu0 0
    %565 = vmatprep.subr.bf16.mxu0 0
    %566 = vmatpush1.bf16.msra.mxu0 0
    %567 = vmatprep.subr.bf16.mxu0 0
    %568 = vmatpush1.bf16.msra.mxu0 0
    %569 = vmatprep.subr.bf16.mxu0 0
    %570 = vmatpush1.bf16.msra.mxu0 0
    %571 = vmatprep.subr.bf16.mxu0 0
    %572 = vmatpush1.bf16.msra.mxu0 0
    %573 = vmatprep.subr.bf16.mxu0 %v392
    %574 = vmatpush1.bf16.msra.mxu0 %v391
    %575 = vmatprep.subr.bf16.mxu0 %v390
    %576 = vmatpush1.bf16.msra.mxu0 %v389
    %577 = vmatprep.subr.bf16.mxu0 0
    %578 = vmatpush2.bf16.msra.mxu0 0
    %579 = vmatprep.subr.bf16.mxu0 0
    %580 = vmatpush2.bf16.msra.mxu0 0
    %581 = vmatprep.subr.bf16.mxu0 0
    %582 = vmatpush2.bf16.msra.mxu0 0
    %583 = vmatprep.subr.bf16.mxu0 0
    %584 = vmatpush2.bf16.msra.mxu0 0
    %585 = vmatprep.subr.bf16.mxu0 0
    %586 = vmatpush2.bf16.msra.mxu0 0
    %587 = vmatprep.subr.bf16.mxu0 0
    %588 = vmatpush2.bf16.msra.mxu0 0
    %589 = vmatprep.subr.bf16.mxu0 0
    %590 = vmatpush2.bf16.msra.mxu0 0
    %591 = vmatprep.subr.bf16.mxu0 0
    %592 = vmatpush2.bf16.msra.mxu0 0
    %593 = vmatprep.mubr.bf16.mxu0 0
    %594 = vmatmul.mubr.bf16.gmra.mxu0 %v559
    %v595 = vpop.f32.mrf.mxu0
    %v596 = vadd.f32 0.0, %v595
    %v597 = vpop.f32.mrf.mxu0
    %v598 = vadd.f32 0.0, %v597
    %v599 = vpop.f32.mrf.mxu0
    %v600 = vpop.f32.mrf.mxu0
    %601 = vdwg.mxu0
    %v603 = vlaneseq
    %v604 = vshrl.u32 %v603, 7
    %v605 = vsub.s32 0, %v604
    %v606 = vrot.slane %v375, %v605
    %v608 = vadd.f32 %v598, %v606
    %609 = vst [vmem:[#allocation10] sm:$0xff] %v608
    %610 = vmax.xlane.f32.xlu0 %v608
    %v611 = vpop.xlane.xlu0 %610
    %vm612 = vcmp.eq.f32.partialorder %v608, %v611
    %v613 = vsel %vm612, %v261, 128
    %v614 = vand.u32 %v613, 65535
    %v615 = vshra.s32 %v613, 16
    %v616 = vcvt.s32.f32 %v614
    %v617 = vcvt.s32.f32 %v615
    %618 = vmin.xlane.f32.xlu0 %v617
    %v619 = vpop.xlane.xlu0 %618
    %vm620 = vcmp.eq.f32.partialorder %v617, %v619
    %v621 = vsel %vm620, %v616, inf
    %622 = vmin.xlane.f32.xlu0 %v621
    %v623 = vpop.xlane.xlu0 %622
    %v624 = vcvt.f32.s32 %v623
    %v625 = vcvt.f32.s32 %v619
    %v626 = vshll.u32 %v625, 16
    %v627 = vadd.s32 %v626, %v624
    %vm628 = vcmp.eq.s32.totalorder %v261, %v627
    %v629 = vsel %vm628, 1.0, 0.0
    %v630 = vpack.c.bf16 %v629, %v629
    %631 = vmatprep.subr.bf16.mxu0 0
    %632 = vmatpush1.bf16.msra.mxu0 %v479
    %633 = vmatprep.subr.bf16.mxu0 0
    %634 = vmatpush1.bf16.msra.mxu0 %v478
    %635 = vmatprep.subr.bf16.mxu0 0
    %636 = vmatpush1.bf16.msra.mxu0 %v477
    %637 = vmatprep.subr.bf16.mxu0 0
    %638 = vmatpush1.bf16.msra.mxu0 %v476
    %639 = vmatprep.subr.bf16.mxu0 0
    %640 = vmatpush1.bf16.msra.mxu0 %v475
    %641 = vmatprep.subr.bf16.mxu0 0
    %642 = vmatpush1.bf16.msra.mxu0 %v474
    %643 = vmatprep.subr.bf16.mxu0 0
    %644 = vmatpush1.bf16.msra.mxu0 %v473
    %645 = vmatprep.subr.bf16.mxu0 0
    %646 = vmatpush1.bf16.msra.mxu0 %v472
    %647 = vmatprep.subr.bf16.mxu0 0
    %648 = vmatpush2.bf16.msra.mxu0 0
    %649 = vmatprep.subr.bf16.mxu0 0
    %650 = vmatpush2.bf16.msra.mxu0 0
    %651 = vmatprep.subr.bf16.mxu0 0
    %652 = vmatpush2.bf16.msra.mxu0 0
    %653 = vmatprep.subr.bf16.mxu0 0
    %654 = vmatpush2.bf16.msra.mxu0 0
    %655 = vmatprep.subr.bf16.mxu0 0
    %656 = vmatpush2.bf16.msra.mxu0 0
    %657 = vmatprep.subr.bf16.mxu0 0
    %658 = vmatpush2.bf16.msra.mxu0 0
    %659 = vmatprep.subr.bf16.mxu0 0
    %660 = vmatpush2.bf16.msra.mxu0 0
    %661 = vmatprep.subr.bf16.mxu0 0
    %662 = vmatpush2.bf16.msra.mxu0 0
    %663 = vmatprep.mubr.bf16.mxu0 0
    %664 = vmatmul.mubr.bf16.gmra.mxu0 %v630
    %v665 = vpop.f32.mrf.mxu0
    %v666 = vadd.f32 %v596, %v665
    %v667 = vpop.f32.mrf.mxu0
    %v668 = vpop.f32.mrf.mxu0
    %v669 = vpop.f32.mrf.mxu0
    %670 = vdwg.mxu0
    %v671 = vadd.f32 %v666, %v347
    %v672 = vmul.f32 %v671, %v353
    %v673 = vtanh.pop %v672
    %v674 = vmul.f32 %v673, %v353
    %v675 = vadd.f32 %v674, %v354
    %v676 = vmul.f32 %v675, %v547
    %678 = vrot.lane.b32.xlu0 %v675, 64
    %v679 = vpop.permute.xlu0 %678
    %v681 = vmul.f32 %v675, %v679
    %683 = vrot.lane.b32.xlu0 %v681, 32
    %v684 = vpop.permute.xlu0 %683
    %v686 = vadd.f32 %v676, %v684
    %v687 = vtanh.pop %v686
    %689 = vrot.lane.b32.xlu0 %v687, 64
    %v690 = vpop.permute.xlu0 %689
    %v692 = vmul.f32 %v675, %v690
    %v693 = vpack.c.bf16 %v692, %v692
    %695 = vrot.lane.b32.xlu0 %v693, 32
    %v696 = vpop.permute.xlu0 %695
    %v698 = vsel %vm101, %v696, 0
    %700 = vmatprep.subr.bf16.mxu0 0
    %701 = vmatpush1.bf16.msra.mxu0 0
    %702 = vmatprep.subr.bf16.mxu0 0
    %703 = vmatpush1.bf16.msra.mxu0 0
    %704 = vmatprep.subr.bf16.mxu0 0
    %705 = vmatpush1.bf16.msra.mxu0 0
    %706 = vmatprep.subr.bf16.mxu0 0
    %707 = vmatpush1.bf16.msra.mxu0 0
    %708 = vmatprep.subr.bf16.mxu0 0
    %709 = vmatpush1.bf16.msra.mxu0 0
    %710 = vmatprep.subr.bf16.mxu0 0
    %711 = vmatpush1.bf16.msra.mxu0 0
    %712 = vmatprep.subr.bf16.mxu0 %v392
    %713 = vmatpush1.bf16.msra.mxu0 %v391
    %714 = vmatprep.subr.bf16.mxu0 %v390
    %715 = vmatpush1.bf16.msra.mxu0 %v389
    %716 = vmatprep.subr.bf16.mxu0 0
    %717 = vmatpush2.bf16.msra.mxu0 0
    %718 = vmatprep.subr.bf16.mxu0 0
    %719 = vmatpush2.bf16.msra.mxu0 0
    %720 = vmatprep.subr.bf16.mxu0 0
    %721 = vmatpush2.bf16.msra.mxu0 0
    %722 = vmatprep.subr.bf16.mxu0 0
    %723 = vmatpush2.bf16.msra.mxu0 0
    %724 = vmatprep.subr.bf16.mxu0 0
    %725 = vmatpush2.bf16.msra.mxu0 0
    %726 = vmatprep.subr.bf16.mxu0 0
    %727 = vmatpush2.bf16.msra.mxu0 0
    %728 = vmatprep.subr.bf16.mxu0 0
    %729 = vmatpush2.bf16.msra.mxu0 0
    %730 = vmatprep.subr.bf16.mxu0 0
    %731 = vmatpush2.bf16.msra.mxu0 0
    %732 = vmatprep.mubr.bf16.mxu0 0
    %733 = vmatmul.mubr.bf16.gmra.mxu0 %v698
    %v734 = vpop.f32.mrf.mxu0
    %v735 = vadd.f32 0.0, %v734
    %v736 = vpop.f32.mrf.mxu0
    %v737 = vadd.f32 0.0, %v736
    %v738 = vpop.f32.mrf.mxu0
    %v739 = vpop.f32.mrf.mxu0
    %740 = vdwg.mxu0
    %v741 = vadd.f32 %v737, %v606
    %s742 = scalar_lea.vmem [#allocation10], 8
    %743 = vst [vmem:[%s742] sm:$0xff] %v741
    %744 = vmax.xlane.f32.xlu0 %v741
    %v745 = vpop.xlane.xlu0 %744
    %vm746 = vcmp.eq.f32.partialorder %v741, %v745
    %v747 = vsel %vm746, %v261, 128
    %v748 = vand.u32 %v747, 65535
    %v749 = vshra.s32 %v747, 16
    %v750 = vcvt.s32.f32 %v748
    %v751 = vcvt.s32.f32 %v749
    %752 = vmin.xlane.f32.xlu0 %v751
    %v753 = vpop.xlane.xlu0 %752
    %vm754 = vcmp.eq.f32.partialorder %v751, %v753
    %v755 = vsel %vm754, %v750, inf
    %756 = vmin.xlane.f32.xlu0 %v755
    %v757 = vpop.xlane.xlu0 %756
    %v758 = vcvt.f32.s32 %v757
    %v759 = vcvt.f32.s32 %v753
    %v760 = vshll.u32 %v759, 16
    %v761 = vadd.s32 %v760, %v758
    %vm762 = vcmp.eq.s32.totalorder %v261, %v761
    %v763 = vsel %vm762, 1.0, 0.0
    %v764 = vpack.c.bf16 %v763, %v763
    %765 = vmatprep.subr.bf16.mxu0 0
    %766 = vmatpush1.bf16.msra.mxu0 %v479
    %767 = vmatprep.subr.bf16.mxu0 0
    %768 = vmatpush1.bf16.msra.mxu0 %v478
    %769 = vmatprep.subr.bf16.mxu0 0
    %770 = vmatpush1.bf16.msra.mxu0 %v477
    %771 = vmatprep.subr.bf16.mxu0 0
    %772 = vmatpush1.bf16.msra.mxu0 %v476
    %773 = vmatprep.subr.bf16.mxu0 0
    %774 = vmatpush1.bf16.msra.mxu0 %v475
    %775 = vmatprep.subr.bf16.mxu0 0
    %776 = vmatpush1.bf16.msra.mxu0 %v474
    %777 = vmatprep.subr.bf16.mxu0 0
    %778 = vmatpush1.bf16.msra.mxu0 %v473
    %779 = vmatprep.subr.bf16.mxu0 0
    %780 = vmatpush1.bf16.msra.mxu0 %v472
    %781 = vmatprep.subr.bf16.mxu0 0
    %782 = vmatpush2.bf16.msra.mxu0 0
    %783 = vmatprep.subr.bf16.mxu0 0
    %784 = vmatpush2.bf16.msra.mxu0 0
    %785 = vmatprep.subr.bf16.mxu0 0
    %786 = vmatpush2.bf16.msra.mxu0 0
    %787 = vmatprep.subr.bf16.mxu0 0
    %788 = vmatpush2.bf16.msra.mxu0 0
    %789 = vmatprep.subr.bf16.mxu0 0
    %790 = vmatpush2.bf16.msra.mxu0 0
    %791 = vmatprep.subr.bf16.mxu0 0
    %792 = vmatpush2.bf16.msra.mxu0 0
    %793 = vmatprep.subr.bf16.mxu0 0
    %794 = vmatpush2.bf16.msra.mxu0 0
    %795 = vmatprep.subr.bf16.mxu0 0
    %796 = vmatpush2.bf16.msra.mxu0 0
    %797 = vmatprep.mubr.bf16.mxu0 0
    %798 = vmatmul.mubr.bf16.gmra.mxu0 %v764
    %v799 = vpop.f32.mrf.mxu0
    %v800 = vadd.f32 %v735, %v799
    %v801 = vpop.f32.mrf.mxu0
    %v802 = vpop.f32.mrf.mxu0
    %v803 = vpop.f32.mrf.mxu0
    %804 = vdwg.mxu0
    %v805 = vadd.f32 %v800, %v347
    %v806 = vmul.f32 %v805, %v353
    %v807 = vtanh.pop %v806
    %v808 = vmul.f32 %v807, %v353
    %v809 = vadd.f32 %v808, %v354
    %v810 = vmul.f32 %v809, %v686
    %812 = vrot.lane.b32.xlu0 %v809, 64
    %v813 = vpop.permute.xlu0 %812
    %v815 = vmul.f32 %v809, %v813
    %817 = vrot.lane.b32.xlu0 %v815, 32
    %v818 = vpop.permute.xlu0 %817
    %v820 = vadd.f32 %v810, %v818
    %v821 = vtanh.pop %v820
    %823 = vrot.lane.b32.xlu0 %v821, 64
    %v824 = vpop.permute.xlu0 %823
    %v826 = vmul.f32 %v809, %v824
    %v827 = vpack.c.bf16 %v826, %v826
    %829 = vrot.lane.b32.xlu0 %v827, 32
    %v830 = vpop.permute.xlu0 %829
    %v832 = vsel %vm101, %v830, 0
    %834 = vmatprep.subr.bf16.mxu0 0
    %835 = vmatpush1.bf16.msra.mxu0 0
    %836 = vmatprep.subr.bf16.mxu0 0
    %837 = vmatpush1.bf16.msra.mxu0 0
    %838 = vmatprep.subr.bf16.mxu0 0
    %839 = vmatpush1.bf16.msra.mxu0 0
    %840 = vmatprep.subr.bf16.mxu0 0
    %841 = vmatpush1.bf16.msra.mxu0 0
    %842 = vmatprep.subr.bf16.mxu0 0
    %843 = vmatpush1.bf16.msra.mxu0 0
    %844 = vmatprep.subr.bf16.mxu0 0
    %845 = vmatpush1.bf16.msra.mxu0 0
    %846 = vmatprep.subr.bf16.mxu0 %v392
    %847 = vmatpush1.bf16.msra.mxu0 %v391
    %848 = vmatprep.subr.bf16.mxu0 %v390
    %849 = vmatpush1.bf16.msra.mxu0 %v389
    %850 = vmatprep.subr.bf16.mxu0 0
    %851 = vmatpush2.bf16.msra.mxu0 0
    %852 = vmatprep.subr.bf16.mxu0 0
    %853 = vmatpush2.bf16.msra.mxu0 0
    %854 = vmatprep.subr.bf16.mxu0 0
    %855 = vmatpush2.bf16.msra.mxu0 0
    %856 = vmatprep.subr.bf16.mxu0 0
    %857 = vmatpush2.bf16.msra.mxu0 0
    %858 = vmatprep.subr.bf16.mxu0 0
    %859 = vmatpush2.bf16.msra.mxu0 0
    %860 = vmatprep.subr.bf16.mxu0 0
    %861 = vmatpush2.bf16.msra.mxu0 0
    %862 = vmatprep.subr.bf16.mxu0 0
    %863 = vmatpush2.bf16.msra.mxu0 0
    %864 = vmatprep.subr.bf16.mxu0 0
    %865 = vmatpush2.bf16.msra.mxu0 0
    %866 = vmatprep.mubr.bf16.mxu0 0
    %867 = vmatmul.mubr.bf16.gmra.mxu0 %v832
    %v868 = vpop.f32.mrf.mxu0
    %v869 = vadd.f32 0.0, %v868
    %v870 = vpop.f32.mrf.mxu0
    %v871 = vadd.f32 0.0, %v870
    %v872 = vpop.f32.mrf.mxu0
    %v873 = vpop.f32.mrf.mxu0
    %874 = vdwg.mxu0
    %v875 = vadd.f32 %v871, %v606
    %s876 = scalar_lea.vmem [#allocation10], 16
    %877 = vst [vmem:[%s876] sm:$0xff] %v875
    %878 = vmax.xlane.f32.xlu0 %v875
    %v879 = vpop.xlane.xlu0 %878
    %vm880 = vcmp.eq.f32.partialorder %v875, %v879
    %v881 = vsel %vm880, %v261, 128
    %v882 = vand.u32 %v881, 65535
    %v883 = vshra.s32 %v881, 16
    %v884 = vcvt.s32.f32 %v882
    %v885 = vcvt.s32.f32 %v883
    %886 = vmin.xlane.f32.xlu0 %v885
    %v887 = vpop.xlane.xlu0 %886
    %vm888 = vcmp.eq.f32.partialorder %v885, %v887
    %v889 = vsel %vm888, %v884, inf
    %890 = vmin.xlane.f32.xlu0 %v889
    %v891 = vpop.xlane.xlu0 %890
    %v892 = vcvt.f32.s32 %v891
    %v893 = vcvt.f32.s32 %v887
    %v894 = vshll.u32 %v893, 16
    %v895 = vadd.s32 %v894, %v892
    %vm896 = vcmp.eq.s32.totalorder %v261, %v895
    %v897 = vsel %vm896, 1.0, 0.0
    %v898 = vpack.c.bf16 %v897, %v897
    %899 = vmatprep.subr.bf16.mxu0 0
    %900 = vmatpush1.bf16.msra.mxu0 %v479
    %901 = vmatprep.subr.bf16.mxu0 0
    %902 = vmatpush1.bf16.msra.mxu0 %v478
    %903 = vmatprep.subr.bf16.mxu0 0
    %904 = vmatpush1.bf16.msra.mxu0 %v477
    %905 = vmatprep.subr.bf16.mxu0 0
    %906 = vmatpush1.bf16.msra.mxu0 %v476
    %907 = vmatprep.subr.bf16.mxu0 0
    %908 = vmatpush1.bf16.msra.mxu0 %v475
    %909 = vmatprep.subr.bf16.mxu0 0
    %910 = vmatpush1.bf16.msra.mxu0 %v474
    %911 = vmatprep.subr.bf16.mxu0 0
    %912 = vmatpush1.bf16.msra.mxu0 %v473
    %913 = vmatprep.subr.bf16.mxu0 0
    %914 = vmatpush1.bf16.msra.mxu0 %v472
    %915 = vmatprep.subr.bf16.mxu0 0
    %916 = vmatpush2.bf16.msra.mxu0 0
    %917 = vmatprep.subr.bf16.mxu0 0
    %918 = vmatpush2.bf16.msra.mxu0 0
    %919 = vmatprep.subr.bf16.mxu0 0
    %920 = vmatpush2.bf16.msra.mxu0 0
    %921 = vmatprep.subr.bf16.mxu0 0
    %922 = vmatpush2.bf16.msra.mxu0 0
    %923 = vmatprep.subr.bf16.mxu0 0
    %924 = vmatpush2.bf16.msra.mxu0 0
    %925 = vmatprep.subr.bf16.mxu0 0
    %926 = vmatpush2.bf16.msra.mxu0 0
    %927 = vmatprep.subr.bf16.mxu0 0
    %928 = vmatpush2.bf16.msra.mxu0 0
    %929 = vmatprep.subr.bf16.mxu0 0
    %930 = vmatpush2.bf16.msra.mxu0 0
    %931 = vmatprep.mubr.bf16.mxu0 0
    %932 = vmatmul.mubr.bf16.gmra.mxu0 %v898
    %v933 = vpop.f32.mrf.mxu0
    %v934 = vadd.f32 %v869, %v933
    %v935 = vpop.f32.mrf.mxu0
    %v936 = vpop.f32.mrf.mxu0
    %v937 = vpop.f32.mrf.mxu0
    %938 = vdwg.mxu0
    %v939 = vadd.f32 %v934, %v347
    %v940 = vmul.f32 %v939, %v353
    %v941 = vtanh.pop %v940
    %v942 = vmul.f32 %v941, %v353
    %v943 = vadd.f32 %v942, %v354
    %v944 = vmul.f32 %v943, %v820
    %946 = vrot.lane.b32.xlu0 %v943, 64
    %v947 = vpop.permute.xlu0 %946
    %v949 = vmul.f32 %v943, %v947
    %951 = vrot.lane.b32.xlu0 %v949, 32
    %v952 = vpop.permute.xlu0 %951
    %v954 = vadd.f32 %v944, %v952
    %v955 = vtanh.pop %v954
    %957 = vrot.lane.b32.xlu0 %v955, 64
    %v958 = vpop.permute.xlu0 %957
    %v960 = vmul.f32 %v943, %v958
    %v961 = vpack.c.bf16 %v960, %v960
    %963 = vrot.lane.b32.xlu0 %v961, 32
    %v964 = vpop.permute.xlu0 %963
    %v966 = vsel %vm101, %v964, 0
    %968 = vmatprep.subr.bf16.mxu0 0
    %969 = vmatpush1.bf16.msra.mxu0 0
    %970 = vmatprep.subr.bf16.mxu0 0
    %971 = vmatpush1.bf16.msra.mxu0 0
    %972 = vmatprep.subr.bf16.mxu0 0
    %973 = vmatpush1.bf16.msra.mxu0 0
    %974 = vmatprep.subr.bf16.mxu0 0
    %975 = vmatpush1.bf16.msra.mxu0 0
    %976 = vmatprep.subr.bf16.mxu0 0
    %977 = vmatpush1.bf16.msra.mxu0 0
    %978 = vmatprep.subr.bf16.mxu0 0
    %979 = vmatpush1.bf16.msra.mxu0 0
    %980 = vmatprep.subr.bf16.mxu0 %v392
    %981 = vmatpush1.bf16.msra.mxu0 %v391
    %982 = vmatprep.subr.bf16.mxu0 %v390
    %983 = vmatpush1.bf16.msra.mxu0 %v389
    %984 = vmatprep.subr.bf16.mxu0 0
    %985 = vmatpush2.bf16.msra.mxu0 0
    %986 = vmatprep.subr.bf16.mxu0 0
    %987 = vmatpush2.bf16.msra.mxu0 0
    %988 = vmatprep.subr.bf16.mxu0 0
    %989 = vmatpush2.bf16.msra.mxu0 0
    %990 = vmatprep.subr.bf16.mxu0 0
    %991 = vmatpush2.bf16.msra.mxu0 0
    %992 = vmatprep.subr.bf16.mxu0 0
    %993 = vmatpush2.bf16.msra.mxu0 0
    %994 = vmatprep.subr.bf16.mxu0 0
    %995 = vmatpush2.bf16.msra.mxu0 0
    %996 = vmatprep.subr.bf16.mxu0 0
    %997 = vmatpush2.bf16.msra.mxu0 0
    %998 = vmatprep.subr.bf16.mxu0 0
    %999 = vmatpush2.bf16.msra.mxu0 0
    %1000 = vmatprep.mubr.bf16.mxu0 0
    %1001 = vmatmul.mubr.bf16.gmra.mxu0 %v966
    %v1002 = vpop.f32.mrf.mxu0
    %v1003 = vadd.f32 0.0, %v1002
    %v1004 = vpop.f32.mrf.mxu0
    %v1005 = vadd.f32 0.0, %v1004
    %v1006 = vpop.f32.mrf.mxu0
    %v1007 = vpop.f32.mrf.mxu0
    %1008 = vdwg.mxu0
    %v1009 = vadd.f32 %v1005, %v606
    %s1010 = scalar_lea.vmem [#allocation10], 24
    %1011 = vst [vmem:[%s1010] sm:$0xff] %v1009
    %1012 = vmax.xlane.f32.xlu0 %v1009
    %v1013 = vpop.xlane.xlu0 %1012
    %vm1014 = vcmp.eq.f32.partialorder %v1009, %v1013
    %v1015 = vsel %vm1014, %v261, 128
    %v1016 = vand.u32 %v1015, 65535
    %v1017 = vshra.s32 %v1015, 16
    %v1018 = vcvt.s32.f32 %v1016
    %v1019 = vcvt.s32.f32 %v1017
    %1020 = vmin.xlane.f32.xlu0 %v1019
    %v1021 = vpop.xlane.xlu0 %1020
    %vm1022 = vcmp.eq.f32.partialorder %v1019, %v1021
    %v1023 = vsel %vm1022, %v1018, inf
    %1024 = vmin.xlane.f32.xlu0 %v1023
    %v1025 = vpop.xlane.xlu0 %1024
    %v1026 = vcvt.f32.s32 %v1025
    %v1027 = vcvt.f32.s32 %v1021
    %v1028 = vshll.u32 %v1027, 16
    %v1029 = vadd.s32 %v1028, %v1026
    %vm1030 = vcmp.eq.s32.totalorder %v261, %v1029
    %v1031 = vsel %vm1030, 1.0, 0.0
    %v1032 = vpack.c.bf16 %v1031, %v1031
    %1033 = vmatprep.subr.bf16.mxu0 0
    %1034 = vmatpush1.bf16.msra.mxu0 %v479
    %1035 = vmatprep.subr.bf16.mxu0 0
    %1036 = vmatpush1.bf16.msra.mxu0 %v478
    %1037 = vmatprep.subr.bf16.mxu0 0
    %1038 = vmatpush1.bf16.msra.mxu0 %v477
    %1039 = vmatprep.subr.bf16.mxu0 0
    %1040 = vmatpush1.bf16.msra.mxu0 %v476
    %1041 = vmatprep.subr.bf16.mxu0 0
    %1042 = vmatpush1.bf16.msra.mxu0 %v475
    %1043 = vmatprep.subr.bf16.mxu0 0
    %1044 = vmatpush1.bf16.msra.mxu0 %v474
    %1045 = vmatprep.subr.bf16.mxu0 0
    %1046 = vmatpush1.bf16.msra.mxu0 %v473
    %1047 = vmatprep.subr.bf16.mxu0 0
    %1048 = vmatpush1.bf16.msra.mxu0 %v472
    %1049 = vmatprep.subr.bf16.mxu0 0
    %1050 = vmatpush2.bf16.msra.mxu0 0
    %1051 = vmatprep.subr.bf16.mxu0 0
    %1052 = vmatpush2.bf16.msra.mxu0 0
    %1053 = vmatprep.subr.bf16.mxu0 0
    %1054 = vmatpush2.bf16.msra.mxu0 0
    %1055 = vmatprep.subr.bf16.mxu0 0
    %1056 = vmatpush2.bf16.msra.mxu0 0
    %1057 = vmatprep.subr.bf16.mxu0 0
    %1058 = vmatpush2.bf16.msra.mxu0 0
    %1059 = vmatprep.subr.bf16.mxu0 0
    %1060 = vmatpush2.bf16.msra.mxu0 0
    %1061 = vmatprep.subr.bf16.mxu0 0
    %1062 = vmatpush2.bf16.msra.mxu0 0
    %1063 = vmatprep.subr.bf16.mxu0 0
    %1064 = vmatpush2.bf16.msra.mxu0 0
    %1065 = vmatprep.mubr.bf16.mxu0 0
    %1066 = vmatmul.mubr.bf16.gmra.mxu0 %v1032
    %v1067 = vpop.f32.mrf.mxu0
    %v1068 = vadd.f32 %v1003, %v1067
    %v1069 = vpop.f32.mrf.mxu0
    %v1070 = vpop.f32.mrf.mxu0
    %v1071 = vpop.f32.mrf.mxu0
    %1072 = vdwg.mxu0
    %v1073 = vadd.f32 %v1068, %v347
    %v1074 = vmul.f32 %v1073, %v353
    %v1075 = vtanh.pop %v1074
    %v1076 = vmul.f32 %v1075, %v353
    %v1077 = vadd.f32 %v1076, %v354
    %v1078 = vmul.f32 %v1077, %v954
    %1080 = vrot.lane.b32.xlu0 %v1077, 64
    %v1081 = vpop.permute.xlu0 %1080
    %v1083 = vmul.f32 %v1077, %v1081
    %1085 = vrot.lane.b32.xlu0 %v1083, 32
    %v1086 = vpop.permute.xlu0 %1085
    %v1088 = vadd.f32 %v1078, %v1086
    %v1089 = vtanh.pop %v1088
    %1091 = vrot.lane.b32.xlu0 %v1089, 64
    %v1092 = vpop.permute.xlu0 %1091
    %v1094 = vmul.f32 %v1077, %v1092
    %v1095 = vpack.c.bf16 %v1094, %v1094
    %1097 = vrot.lane.b32.xlu0 %v1095, 32
    %v1098 = vpop.permute.xlu0 %1097
    %v1100 = vsel %vm101, %v1098, 0
    %1102 = vmatprep.subr.bf16.mxu0 0
    %1103 = vmatpush1.bf16.msra.mxu0 0
    %1104 = vmatprep.subr.bf16.mxu0 0
    %1105 = vmatpush1.bf16.msra.mxu0 0
    %1106 = vmatprep.subr.bf16.mxu0 0
    %1107 = vmatpush1.bf16.msra.mxu0 0
    %1108 = vmatprep.subr.bf16.mxu0 0
    %1109 = vmatpush1.bf16.msra.mxu0 0
    %1110 = vmatprep.subr.bf16.mxu0 0
    %1111 = vmatpush1.bf16.msra.mxu0 0
    %1112 = vmatprep.subr.bf16.mxu0 0
    %1113 = vmatpush1.bf16.msra.mxu0 0
    %1114 = vmatprep.subr.bf16.mxu0 %v392
    %1115 = vmatpush1.bf16.msra.mxu0 %v391
    %1116 = vmatprep.subr.bf16.mxu0 %v390
    %1117 = vmatpush1.bf16.msra.mxu0 %v389
    %1118 = vmatprep.subr.bf16.mxu0 0
    %1119 = vmatpush2.bf16.msra.mxu0 0
    %1120 = vmatprep.subr.bf16.mxu0 0
    %1121 = vmatpush2.bf16.msra.mxu0 0
    %1122 = vmatprep.subr.bf16.mxu0 0
    %1123 = vmatpush2.bf16.msra.mxu0 0
    %1124 = vmatprep.subr.bf16.mxu0 0
    %1125 = vmatpush2.bf16.msra.mxu0 0
    %1126 = vmatprep.subr.bf16.mxu0 0
    %1127 = vmatpush2.bf16.msra.mxu0 0
    %1128 = vmatprep.subr.bf16.mxu0 0
    %1129 = vmatpush2.bf16.msra.mxu0 0
    %1130 = vmatprep.subr.bf16.mxu0 0
    %1131 = vmatpush2.bf16.msra.mxu0 0
    %1132 = vmatprep.subr.bf16.mxu0 0
    %1133 = vmatpush2.bf16.msra.mxu0 0
    %1134 = vmatprep.mubr.bf16.mxu0 0
    %1135 = vmatmul.mubr.bf16.gmra.mxu0 %v1100
    %v1136 = vpop.f32.mrf.mxu0
    %v1137 = vadd.f32 0.0, %v1136
    %v1138 = vpop.f32.mrf.mxu0
    %v1139 = vadd.f32 0.0, %v1138
    %v1140 = vpop.f32.mrf.mxu0
    %v1141 = vpop.f32.mrf.mxu0
    %1142 = vdwg.mxu0
    %v1143 = vadd.f32 %v1139, %v606
    %s1144 = scalar_lea.vmem [#allocation10], 32
    %1145 = vst [vmem:[%s1144] sm:$0xff] %v1143
    %1146 = vmax.xlane.f32.xlu0 %v1143
    %v1147 = vpop.xlane.xlu0 %1146
    %vm1148 = vcmp.eq.f32.partialorder %v1143, %v1147
    %v1149 = vsel %vm1148, %v261, 128
    %v1150 = vand.u32 %v1149, 65535
    %v1151 = vshra.s32 %v1149, 16
    %v1152 = vcvt.s32.f32 %v1150
    %v1153 = vcvt.s32.f32 %v1151
    %1154 = vmin.xlane.f32.xlu0 %v1153
    %v1155 = vpop.xlane.xlu0 %1154
    %vm1156 = vcmp.eq.f32.partialorder %v1153, %v1155
    %v1157 = vsel %vm1156, %v1152, inf
    %1158 = vmin.xlane.f32.xlu0 %v1157
    %v1159 = vpop.xlane.xlu0 %1158
    %v1160 = vcvt.f32.s32 %v1159
    %v1161 = vcvt.f32.s32 %v1155
    %v1162 = vshll.u32 %v1161, 16
    %v1163 = vadd.s32 %v1162, %v1160
    %vm1164 = vcmp.eq.s32.totalorder %v261, %v1163
    %v1165 = vsel %vm1164, 1.0, 0.0
    %v1166 = vpack.c.bf16 %v1165, %v1165
    %1167 = vmatprep.subr.bf16.mxu0 0
    %1168 = vmatpush1.bf16.msra.mxu0 %v479
    %1169 = vmatprep.subr.bf16.mxu0 0
    %1170 = vmatpush1.bf16.msra.mxu0 %v478
    %1171 = vmatprep.subr.bf16.mxu0 0
    %1172 = vmatpush1.bf16.msra.mxu0 %v477
    %1173 = vmatprep.subr.bf16.mxu0 0
    %1174 = vmatpush1.bf16.msra.mxu0 %v476
    %1175 = vmatprep.subr.bf16.mxu0 0
    %1176 = vmatpush1.bf16.msra.mxu0 %v475
    %1177 = vmatprep.subr.bf16.mxu0 0
    %1178 = vmatpush1.bf16.msra.mxu0 %v474
    %1179 = vmatprep.subr.bf16.mxu0 0
    %1180 = vmatpush1.bf16.msra.mxu0 %v473
    %1181 = vmatprep.subr.bf16.mxu0 0
    %1182 = vmatpush1.bf16.msra.mxu0 %v472
    %1183 = vmatprep.subr.bf16.mxu0 0
    %1184 = vmatpush2.bf16.msra.mxu0 0
    %1185 = vmatprep.subr.bf16.mxu0 0
    %1186 = vmatpush2.bf16.msra.mxu0 0
    %1187 = vmatprep.subr.bf16.mxu0 0
    %1188 = vmatpush2.bf16.msra.mxu0 0
    %1189 = vmatprep.subr.bf16.mxu0 0
    %1190 = vmatpush2.bf16.msra.mxu0 0
    %1191 = vmatprep.subr.bf16.mxu0 0
    %1192 = vmatpush2.bf16.msra.mxu0 0
    %1193 = vmatprep.subr.bf16.mxu0 0
    %1194 = vmatpush2.bf16.msra.mxu0 0
    %1195 = vmatprep.subr.bf16.mxu0 0
    %1196 = vmatpush2.bf16.msra.mxu0 0
    %1197 = vmatprep.subr.bf16.mxu0 0
    %1198 = vmatpush2.bf16.msra.mxu0 0
    %1199 = vmatprep.mubr.bf16.mxu0 0
    %1200 = vmatmul.mubr.bf16.gmra.mxu0 %v1166
    %v1201 = vpop.f32.mrf.mxu0
    %v1202 = vadd.f32 %v1137, %v1201
    %v1203 = vpop.f32.mrf.mxu0
    %v1204 = vpop.f32.mrf.mxu0
    %v1205 = vpop.f32.mrf.mxu0
    %1206 = vdwg.mxu0
    %v1207 = vadd.f32 %v1202, %v347
    %v1208 = vmul.f32 %v1207, %v353
    %v1209 = vtanh.pop %v1208
    %v1210 = vmul.f32 %v1209, %v353
    %v1211 = vadd.f32 %v1210, %v354
    %v1212 = vmul.f32 %v1211, %v1088
    %1214 = vrot.lane.b32.xlu0 %v1211, 64
    %v1215 = vpop.permute.xlu0 %1214
    %v1217 = vmul.f32 %v1211, %v1215
    %1219 = vrot.lane.b32.xlu0 %v1217, 32
    %v1220 = vpop.permute.xlu0 %1219
    %v1222 = vadd.f32 %v1212, %v1220
    %v1223 = vtanh.pop %v1222
    %1225 = vrot.lane.b32.xlu0 %v1223, 64
    %v1226 = vpop.permute.xlu0 %1225
    %v1228 = vmul.f32 %v1211, %v1226
    %v1229 = vpack.c.bf16 %v1228, %v1228
    %1231 = vrot.lane.b32.xlu0 %v1229, 32
    %v1232 = vpop.permute.xlu0 %1231
    %v1234 = vsel %vm101, %v1232, 0
    %1236 = vmatprep.subr.bf16.mxu0 0
    %1237 = vmatpush1.bf16.msra.mxu0 0
    %1238 = vmatprep.subr.bf16.mxu0 0
    %1239 = vmatpush1.bf16.msra.mxu0 0
    %1240 = vmatprep.subr.bf16.mxu0 0
    %1241 = vmatpush1.bf16.msra.mxu0 0
    %1242 = vmatprep.subr.bf16.mxu0 0
    %1243 = vmatpush1.bf16.msra.mxu0 0
    %1244 = vmatprep.subr.bf16.mxu0 0
    %1245 = vmatpush1.bf16.msra.mxu0 0
    %1246 = vmatprep.subr.bf16.mxu0 0
    %1247 = vmatpush1.bf16.msra.mxu0 0
    %1248 = vmatprep.subr.bf16.mxu0 %v392
    %1249 = vmatpush1.bf16.msra.mxu0 %v391
    %1250 = vmatprep.subr.bf16.mxu0 %v390
    %1251 = vmatpush1.bf16.msra.mxu0 %v389
    %1252 = vmatprep.subr.bf16.mxu0 0
    %1253 = vmatpush2.bf16.msra.mxu0 0
    %1254 = vmatprep.subr.bf16.mxu0 0
    %1255 = vmatpush2.bf16.msra.mxu0 0
    %1256 = vmatprep.subr.bf16.mxu0 0
    %1257 = vmatpush2.bf16.msra.mxu0 0
    %1258 = vmatprep.subr.bf16.mxu0 0
    %1259 = vmatpush2.bf16.msra.mxu0 0
    %1260 = vmatprep.subr.bf16.mxu0 0
    %1261 = vmatpush2.bf16.msra.mxu0 0
    %1262 = vmatprep.subr.bf16.mxu0 0
    %1263 = vmatpush2.bf16.msra.mxu0 0
    %1264 = vmatprep.subr.bf16.mxu0 0
    %1265 = vmatpush2.bf16.msra.mxu0 0
    %1266 = vmatprep.subr.bf16.mxu0 0
    %1267 = vmatpush2.bf16.msra.mxu0 0
    %1268 = vmatprep.mubr.bf16.mxu0 0
    %1269 = vmatmul.mubr.bf16.gmra.mxu0 %v1234
    %v1270 = vpop.f32.mrf.mxu0
    %v1271 = vadd.f32 0.0, %v1270
    %v1272 = vpop.f32.mrf.mxu0
    %v1273 = vadd.f32 0.0, %v1272
    %v1274 = vpop.f32.mrf.mxu0
    %v1275 = vpop.f32.mrf.mxu0
    %1276 = vdwg.mxu0
    %v1277 = vadd.f32 %v1273, %v606
    %s1278 = scalar_lea.vmem [#allocation10], 40
    %1279 = vst [vmem:[%s1278] sm:$0xff] %v1277
    %1280 = vmax.xlane.f32.xlu0 %v1277
    %v1281 = vpop.xlane.xlu0 %1280
    %vm1282 = vcmp.eq.f32.partialorder %v1277, %v1281
    %v1283 = vsel %vm1282, %v261, 128
    %v1284 = vand.u32 %v1283, 65535
    %v1285 = vshra.s32 %v1283, 16
    %v1286 = vcvt.s32.f32 %v1284
    %v1287 = vcvt.s32.f32 %v1285
    %1288 = vmin.xlane.f32.xlu0 %v1287
    %v1289 = vpop.xlane.xlu0 %1288
    %vm1290 = vcmp.eq.f32.partialorder %v1287, %v1289
    %v1291 = vsel %vm1290, %v1286, inf
    %1292 = vmin.xlane.f32.xlu0 %v1291
    %v1293 = vpop.xlane.xlu0 %1292
    %v1294 = vcvt.f32.s32 %v1293
    %v1295 = vcvt.f32.s32 %v1289
    %v1296 = vshll.u32 %v1295, 16
    %v1297 = vadd.s32 %v1296, %v1294
    %vm1298 = vcmp.eq.s32.totalorder %v261, %v1297
    %v1299 = vsel %vm1298, 1.0, 0.0
    %v1300 = vpack.c.bf16 %v1299, %v1299
    %1301 = vmatprep.subr.bf16.mxu0 0
    %1302 = vmatpush1.bf16.msra.mxu0 %v479
    %1303 = vmatprep.subr.bf16.mxu0 0
    %1304 = vmatpush1.bf16.msra.mxu0 %v478
    %1305 = vmatprep.subr.bf16.mxu0 0
    %1306 = vmatpush1.bf16.msra.mxu0 %v477
    %1307 = vmatprep.subr.bf16.mxu0 0
    %1308 = vmatpush1.bf16.msra.mxu0 %v476
    %1309 = vmatprep.subr.bf16.mxu0 0
    %1310 = vmatpush1.bf16.msra.mxu0 %v475
    %1311 = vmatprep.subr.bf16.mxu0 0
    %1312 = vmatpush1.bf16.msra.mxu0 %v474
    %1313 = vmatprep.subr.bf16.mxu0 0
    %1314 = vmatpush1.bf16.msra.mxu0 %v473
    %1315 = vmatprep.subr.bf16.mxu0 0
    %1316 = vmatpush1.bf16.msra.mxu0 %v472
    %1317 = vmatprep.subr.bf16.mxu0 0
    %1318 = vmatpush2.bf16.msra.mxu0 0
    %1319 = vmatprep.subr.bf16.mxu0 0
    %1320 = vmatpush2.bf16.msra.mxu0 0
    %1321 = vmatprep.subr.bf16.mxu0 0
    %1322 = vmatpush2.bf16.msra.mxu0 0
    %1323 = vmatprep.subr.bf16.mxu0 0
    %1324 = vmatpush2.bf16.msra.mxu0 0
    %1325 = vmatprep.subr.bf16.mxu0 0
    %1326 = vmatpush2.bf16.msra.mxu0 0
    %1327 = vmatprep.subr.bf16.mxu0 0
    %1328 = vmatpush2.bf16.msra.mxu0 0
    %1329 = vmatprep.subr.bf16.mxu0 0
    %1330 = vmatpush2.bf16.msra.mxu0 0
    %1331 = vmatprep.subr.bf16.mxu0 0
    %1332 = vmatpush2.bf16.msra.mxu0 0
    %1333 = vmatprep.mubr.bf16.mxu0 0
    %1334 = vmatmul.mubr.bf16.gmra.mxu0 %v1300
    %v1335 = vpop.f32.mrf.mxu0
    %v1336 = vadd.f32 %v1271, %v1335
    %v1337 = vpop.f32.mrf.mxu0
    %v1338 = vpop.f32.mrf.mxu0
    %v1339 = vpop.f32.mrf.mxu0
    %1340 = vdwg.mxu0
    %v1341 = vadd.f32 %v1336, %v347
    %v1342 = vmul.f32 %v1341, %v353
    %v1343 = vtanh.pop %v1342
    %v1344 = vmul.f32 %v1343, %v353
    %v1345 = vadd.f32 %v1344, %v354
    %v1346 = vmul.f32 %v1345, %v1222
    %1348 = vrot.lane.b32.xlu0 %v1345, 64
    %v1349 = vpop.permute.xlu0 %1348
    %v1351 = vmul.f32 %v1345, %v1349
    %1353 = vrot.lane.b32.xlu0 %v1351, 32
    %v1354 = vpop.permute.xlu0 %1353
    %v1356 = vadd.f32 %v1346, %v1354
    %v1357 = vtanh.pop %v1356
    %1359 = vrot.lane.b32.xlu0 %v1357, 64
    %v1360 = vpop.permute.xlu0 %1359
    %v1362 = vmul.f32 %v1345, %v1360
    %v1363 = vpack.c.bf16 %v1362, %v1362
    %1365 = vrot.lane.b32.xlu0 %v1363, 32
    %v1366 = vpop.permute.xlu0 %1365
    %v1368 = vsel %vm101, %v1366, 0
    %1370 = vmatprep.subr.bf16.mxu0 0
    %1371 = vmatpush1.bf16.msra.mxu0 0
    %1372 = vmatprep.subr.bf16.mxu0 0
    %1373 = vmatpush1.bf16.msra.mxu0 0
    %1374 = vmatprep.subr.bf16.mxu0 0
    %1375 = vmatpush1.bf16.msra.mxu0 0
    %1376 = vmatprep.subr.bf16.mxu0 0
    %1377 = vmatpush1.bf16.msra.mxu0 0
    %1378 = vmatprep.subr.bf16.mxu0 0
    %1379 = vmatpush1.bf16.msra.mxu0 0
    %1380 = vmatprep.subr.bf16.mxu0 0
    %1381 = vmatpush1.bf16.msra.mxu0 0
    %1382 = vmatprep.subr.bf16.mxu0 %v392
    %1383 = vmatpush1.bf16.msra.mxu0 %v391
    %1384 = vmatprep.subr.bf16.mxu0 %v390
    %1385 = vmatpush1.bf16.msra.mxu0 %v389
    %1386 = vmatprep.subr.bf16.mxu0 0
    %1387 = vmatpush2.bf16.msra.mxu0 0
    %1388 = vmatprep.subr.bf16.mxu0 0
    %1389 = vmatpush2.bf16.msra.mxu0 0
    %1390 = vmatprep.subr.bf16.mxu0 0
    %1391 = vmatpush2.bf16.msra.mxu0 0
    %1392 = vmatprep.subr.bf16.mxu0 0
    %1393 = vmatpush2.bf16.msra.mxu0 0
    %1394 = vmatprep.subr.bf16.mxu0 0
    %1395 = vmatpush2.bf16.msra.mxu0 0
    %1396 = vmatprep.subr.bf16.mxu0 0
    %1397 = vmatpush2.bf16.msra.mxu0 0
    %1398 = vmatprep.subr.bf16.mxu0 0
    %1399 = vmatpush2.bf16.msra.mxu0 0
    %1400 = vmatprep.subr.bf16.mxu0 0
    %1401 = vmatpush2.bf16.msra.mxu0 0
    %1402 = vmatprep.mubr.bf16.mxu0 0
    %1403 = vmatmul.mubr.bf16.gmra.mxu0 %v1368
    %v1404 = vpop.f32.mrf.mxu0
    %v1405 = vadd.f32 0.0, %v1404
    %v1406 = vpop.f32.mrf.mxu0
    %v1407 = vadd.f32 0.0, %v1406
    %v1408 = vpop.f32.mrf.mxu0
    %v1409 = vpop.f32.mrf.mxu0
    %1410 = vdwg.mxu0
    %v1411 = vadd.f32 %v1407, %v606
    %s1412 = scalar_lea.vmem [#allocation10], 48
    %1413 = vst [vmem:[%s1412] sm:$0xff] %v1411
    %1414 = vmax.xlane.f32.xlu0 %v1411
    %v1415 = vpop.xlane.xlu0 %1414
    %vm1416 = vcmp.eq.f32.partialorder %v1411, %v1415
    %v1417 = vsel %vm1416, %v261, 128
    %v1418 = vand.u32 %v1417, 65535
    %v1419 = vshra.s32 %v1417, 16
    %v1420 = vcvt.s32.f32 %v1418
    %v1421 = vcvt.s32.f32 %v1419
    %1422 = vmin.xlane.f32.xlu0 %v1421
    %v1423 = vpop.xlane.xlu0 %1422
    %vm1424 = vcmp.eq.f32.partialorder %v1421, %v1423
    %v1425 = vsel %vm1424, %v1420, inf
    %1426 = vmin.xlane.f32.xlu0 %v1425
    %v1427 = vpop.xlane.xlu0 %1426
    %v1428 = vcvt.f32.s32 %v1427
    %v1429 = vcvt.f32.s32 %v1423
    %v1430 = vshll.u32 %v1429, 16
    %v1431 = vadd.s32 %v1430, %v1428
    %vm1432 = vcmp.eq.s32.totalorder %v261, %v1431
    %v1433 = vsel %vm1432, 1.0, 0.0
    %v1434 = vpack.c.bf16 %v1433, %v1433
    %1435 = vmatprep.subr.bf16.mxu0 0
    %1436 = vmatpush1.bf16.msra.mxu0 %v479
    %1437 = vmatprep.subr.bf16.mxu0 0
    %1438 = vmatpush1.bf16.msra.mxu0 %v478
    %1439 = vmatprep.subr.bf16.mxu0 0
    %1440 = vmatpush1.bf16.msra.mxu0 %v477
    %1441 = vmatprep.subr.bf16.mxu0 0
    %1442 = vmatpush1.bf16.msra.mxu0 %v476
    %1443 = vmatprep.subr.bf16.mxu0 0
    %1444 = vmatpush1.bf16.msra.mxu0 %v475
    %1445 = vmatprep.subr.bf16.mxu0 0
    %1446 = vmatpush1.bf16.msra.mxu0 %v474
    %1447 = vmatprep.subr.bf16.mxu0 0
    %1448 = vmatpush1.bf16.msra.mxu0 %v473
    %1449 = vmatprep.subr.bf16.mxu0 0
    %1450 = vmatpush1.bf16.msra.mxu0 %v472
    %1451 = vmatprep.subr.bf16.mxu0 0
    %1452 = vmatpush2.bf16.msra.mxu0 0
    %1453 = vmatprep.subr.bf16.mxu0 0
    %1454 = vmatpush2.bf16.msra.mxu0 0
    %1455 = vmatprep.subr.bf16.mxu0 0
    %1456 = vmatpush2.bf16.msra.mxu0 0
    %1457 = vmatprep.subr.bf16.mxu0 0
    %1458 = vmatpush2.bf16.msra.mxu0 0
    %1459 = vmatprep.subr.bf16.mxu0 0
    %1460 = vmatpush2.bf16.msra.mxu0 0
    %1461 = vmatprep.subr.bf16.mxu0 0
    %1462 = vmatpush2.bf16.msra.mxu0 0
    %1463 = vmatprep.subr.bf16.mxu0 0
    %1464 = vmatpush2.bf16.msra.mxu0 0
    %1465 = vmatprep.subr.bf16.mxu0 0
    %1466 = vmatpush2.bf16.msra.mxu0 0
    %1467 = vmatprep.mubr.bf16.mxu0 0
    %1468 = vmatmul.mubr.bf16.gmra.mxu0 %v1434
    %v1469 = vpop.f32.mrf.mxu0
    %v1470 = vadd.f32 %v1405, %v1469
    %v1471 = vpop.f32.mrf.mxu0
    %v1472 = vpop.f32.mrf.mxu0
    %v1473 = vpop.f32.mrf.mxu0
    %1474 = vdwg.mxu0
    %v1475 = vadd.f32 %v1470, %v347
    %v1476 = vmul.f32 %v1475, %v353
    %v1477 = vtanh.pop %v1476
    %v1478 = vmul.f32 %v1477, %v353
    %v1479 = vadd.f32 %v1478, %v354
    %v1480 = vmul.f32 %v1479, %v1356
    %1482 = vrot.lane.b32.xlu0 %v1479, 64
    %v1483 = vpop.permute.xlu0 %1482
    %v1485 = vmul.f32 %v1479, %v1483
    %1487 = vrot.lane.b32.xlu0 %v1485, 32
    %v1488 = vpop.permute.xlu0 %1487
    %v1490 = vadd.f32 %v1480, %v1488
    %v1491 = vtanh.pop %v1490
    %1493 = vrot.lane.b32.xlu0 %v1491, 64
    %v1494 = vpop.permute.xlu0 %1493
    %v1496 = vmul.f32 %v1479, %v1494
    %v1497 = vpack.c.bf16 %v1496, %v1496
    %1499 = vrot.lane.b32.xlu0 %v1497, 32
    %v1500 = vpop.permute.xlu0 %1499
    %v1502 = vsel %vm101, %v1500, 0
    %1504 = vmatprep.subr.bf16.mxu0 0
    %1505 = vmatpush1.bf16.msra.mxu0 0
    %1506 = vmatprep.subr.bf16.mxu0 0
    %1507 = vmatpush1.bf16.msra.mxu0 0
    %1508 = vmatprep.subr.bf16.mxu0 0
    %1509 = vmatpush1.bf16.msra.mxu0 0
    %1510 = vmatprep.subr.bf16.mxu0 0
    %1511 = vmatpush1.bf16.msra.mxu0 0
    %1512 = vmatprep.subr.bf16.mxu0 0
    %1513 = vmatpush1.bf16.msra.mxu0 0
    %1514 = vmatprep.subr.bf16.mxu0 0
    %1515 = vmatpush1.bf16.msra.mxu0 0
    %1516 = vmatprep.subr.bf16.mxu0 0
    %1517 = vmatpush1.bf16.msra.mxu0 %v392
    %1518 = vmatprep.subr.bf16.mxu0 0
    %1519 = vmatpush1.bf16.msra.mxu0 %v390
    %1520 = vmatprep.subr.bf16.mxu0 0
    %1521 = vmatpush2.bf16.msra.mxu0 0
    %1522 = vmatprep.subr.bf16.mxu0 0
    %1523 = vmatpush2.bf16.msra.mxu0 0
    %1524 = vmatprep.subr.bf16.mxu0 0
    %1525 = vmatpush2.bf16.msra.mxu0 0
    %1526 = vmatprep.subr.bf16.mxu0 0
    %1527 = vmatpush2.bf16.msra.mxu0 0
    %1528 = vmatprep.subr.bf16.mxu0 0
    %1529 = vmatpush2.bf16.msra.mxu0 0
    %1530 = vmatprep.subr.bf16.mxu0 0
    %1531 = vmatpush2.bf16.msra.mxu0 0
    %1532 = vmatprep.subr.bf16.mxu0 0
    %1533 = vmatpush2.bf16.msra.mxu0 0
    %1534 = vmatprep.subr.bf16.mxu0 0
    %1535 = vmatpush2.bf16.msra.mxu0 0
    %1536 = vmatprep.mubr.bf16.mxu0 0
    %1537 = vmatmul.mubr.bf16.gmra.mxu0 %v1502
    %v1538 = vpop.f32.mrf.mxu0
    %v1539 = vadd.f32 %v606, %v1538
    %v1540 = vpop.f32.mrf.mxu0
    %v1541 = vpop.f32.mrf.mxu0
    %v1542 = vpop.f32.mrf.mxu0
    %1543 = vdwg.mxu0
    %s1544 = scalar_lea.vmem [#allocation10], 56
    %1545 = vst [vmem:[%s1544] sm:$0xff] %v1539
    // Predicated region
    $region54: #{tpu_custom_call.1} parent=1 // pred_check
      _
    $region55: #{tpu_custom_call.1} parent=1 // pred_check_branch
      %1547 = sbr.rel (0) target = $region57
    $region56: #{tpu_custom_call.1} parent=1 // pred_region
      %s1549 = ssub.s32 1024, 1024
      %1550 = vsyncadd [#allocation4], %s1549
      %s1551 = sshll.u32 [#allocation10], 4
      %s1552 = int_to_ptr.vmem [resolvable:$true] %s1551
      %1557 = dma.vmem_to_hbm [thread:$0]  %s1552, 1024, %s9, [#allocation4], 128, 128, 8
    $region57: #{tpu_custom_call.1} parent=1 // pred_fallthru
      _
    // Predicated region
    $region58: #{tpu_custom_call.1} parent=1 // pred_check
      _
    $region59: #{tpu_custom_call.1} parent=1 // pred_check_branch
      %1559 = sbr.rel (0) target = $region61
    $region60: #{tpu_custom_call.1} parent=1 // pred_region
      %1560 = dma.done [#allocation4], 1024
    $region61: #{tpu_custom_call.1} parent=1 // pred_fallthru
      _
    %1561 = vsyncpa [#allocation3], 1
    %1562 = vsyncpa [#allocation6], 1
    %1563 = vsyncpa [#allocation9], 1
    %1564 = vsyncpa [#allocation4], 1

</llo_original>
